<compile_context>
chip_gen: v5e
topology: v5e:2x2
jax: 0.10.0
libtpu: 0.0.40
codegen_flags: <defaults>
</compile_context>

<pallas_src>
import jax
import jax.numpy as jnp
import numpy as np
from jax.experimental import pallas as pl
from jax.experimental.pallas import tpu as pltpu


# ------------------------------- fused Pallas kernel ------------------------------------
def _brnns_char_kernel(x_ref, w_ih_ref, w_hh_ref, b_ref, out_ref, g_scr, act_scr):
    """All bidirectional LSTM layers for one sequence, fused in a single invocation.

    x_ref:    (T, E)            layer-0 input sequence
    w_ih_ref: (L, E_max, 8h)    input->gate weights (zero-padded rows beyond each layer's
                                input width), lanes = [i_f,i_b,f_f,f_b,o_f,o_b,g_f,g_b]
    w_hh_ref: (L, 2h, 8h)       block-diagonal recurrent weights (rows = [h_fwd | h_bwd])
    b_ref:    (L, 1, 8h)        bias_ih + bias_hh, same lane layout
    out_ref:  (T, 2h)           last layer's [h_fwd(t) | h_bwd(t)] (PyTorch concat order)
    g_scr:    (T, 8h) VMEM      per-layer input-gate pre-activations
    act_scr:  (T, 2h) VMEM      inter-layer activation (never leaves VMEM)
    """
    T, E = x_ref.shape
    L, _, H8 = w_ih_ref.shape
    H2 = H8 // 4          # 2*h (one gate, both directions)
    H = H2 // 2           # h
    f32 = jnp.float32

    # Hoisted lane constants (layer-independent).
    lane8 = jax.lax.broadcasted_iota(jnp.int32, (1, H8), 1)
    lane2 = jax.lax.broadcasted_iota(jnp.int32, (1, H2), 1)
    is_fwd8 = (lane8 % H2) < H            # forward-direction lanes within each gate block
    fwd_mask2 = lane2 < H
    bwd_mask2 = lane2 >= H
    is_sig = lane8 < 3 * H2               # i, f, o lanes (sigmoid); last block is g (tanh)
    pre_scale = jnp.where(is_sig, f32(0.5), f32(1.0))   # also the post-tanh multiplier
    post_add = jnp.where(is_sig, f32(0.5), f32(0.0))

    for l in range(L):                                   # static layer loop (L known)
        din = E if l == 0 else H2
        inp = x_ref[...] if l == 0 else act_scr[...]
        w_ih_l = w_ih_ref[l, 0:din, :]                   # (din, 8h)
        # One MXU matmul: every timestep, all gates, both directions (accurate f32).
        g_scr[...] = jnp.dot(inp, w_ih_l, preferred_element_type=f32,
                             precision=jax.lax.Precision.HIGHEST) + b_ref[l, :, :]
        w_hh_l = w_hh_ref[l]                             # (2h, 8h), loaded once per layer
        dst = out_ref if l == L - 1 else act_scr         # (T, 2h)

        def step(t, carry, w_hh_l=w_hh_l, dst=dst):
            h_c, c_c = carry                             # (1, 2h) each, f32
            g_t = g_scr[pl.ds(t, 1), :]                  # row t        (fwd lanes)
            g_r = g_scr[pl.ds(T - 1 - t, 1), :]          # row T-1-t    (bwd lanes)
            # Recurrent projection: single-pass bf16 MXU (DEFAULT) -- critical path.
            gates = jnp.where(is_fwd8, g_t, g_r) + jnp.dot(
                h_c, w_hh_l, preferred_element_type=f32,
                precision=jax.lax.Precision.DEFAULT)     # (1, 8h)
            th = jnp.tanh(gates * pre_scale)             # one EUP dispatch for all gates
            act = th * pre_scale + post_add              # sigmoid/tanh selected per lane
            i = act[:, 0:H2]
            f = act[:, H2:2 * H2]
            o = act[:, 2 * H2:3 * H2]
            g = act[:, 3 * H2:4 * H2]
            c_n = f * c_c + i * g
            h_n = o * jnp.tanh(c_n)
            # h_n = [h_fwd(t) | h_bwd(T-1-t)]: scatter each half to its true time row.
            pltpu.store(dst.at[pl.ds(t, 1), :], h_n, mask=fwd_mask2)
            pltpu.store(dst.at[pl.ds(T - 1 - t, 1), :], h_n, mask=bwd_mask2)
            return h_n, c_n

        zeros = jnp.zeros((1, H2), f32)
        jax.lax.fori_loop(0, T, step, (zeros, zeros), unroll=True)


def _full_spec(shape):
    zeros = (0,) * len(shape)
    return pl.BlockSpec(shape, lambda i, z=zeros: z)


def _bilstm_stack(x, w_ih_all, w_hh_all, b_all):
    T, E = x.shape
    L, E_max, H8 = w_ih_all.shape
    H2 = H8 // 4
    return pl.pallas_call(
        _brnns_char_kernel,
        grid=(1,),
        in_specs=[_full_spec((T, E)), _full_spec((L, E_max, H8)),
                  _full_spec((L, H2, H8)), _full_spec((L, 1, H8))],
        out_specs=_full_spec((T, H2)),
        out_shape=jax.ShapeDtypeStruct((T, H2), jnp.float32),
        scratch_shapes=[pltpu.VMEM((T, H8), jnp.float32),
                        pltpu.VMEM((T, H2), jnp.float32)],
        compiler_params=pltpu.CompilerParams(dimension_semantics=("arbitrary",)),
    )(x, w_ih_all, w_hh_all, b_all)


# ------------------------------- weight packing (once) ----------------------------------
_GATE_ORDER = (0, 1, 3, 2)   # PyTorch row order [i, f, g, o] -> kernel lane order [i, f, o, g]


def _pack_layer(fwd, bwd, h):
    """Pack one layer's PyTorch-layout LSTM weights into the kernel's lane layout.

    fwd/bwd = (weight_ih (4h, in), weight_hh (4h, h), bias_ih (4h,), bias_hh (4h,)).
    Returns w_ih (in, 8h), w_hh (2h, 8h), b (1, 8h) with column layout
    [i_f, i_b, f_f, f_b, o_f, o_b, g_f, g_b] (each block h wide).
    """
    w_ih_f, w_hh_f, b_ih_f, b_hh_f = fwd
    w_ih_b, w_hh_b, b_ih_b, b_hh_b = bwd

    def interleave(wf, wb):                      # (., 4h) x 2 -> (., 8h), gates reordered
        cols = []
        for k in _GATE_ORDER:
            cols.append(wf[:, k * h:(k + 1) * h])
            cols.append(wb[:, k * h:(k + 1) * h])
        return jnp.concatenate(cols, axis=1)

    w_ih = interleave(w_ih_f.T, w_ih_b.T)        # (in, 8h)

    whf, whb = w_hh_f.T, w_hh_b.T                # (h, 4h)
    zero = jnp.zeros((h, h), jnp.float32)
    blocks = []
    for k in _GATE_ORDER:
        top = jnp.concatenate([whf[:, k * h:(k + 1) * h], zero], axis=1)
        bot = jnp.concatenate([zero, whb[:, k * h:(k + 1) * h]], axis=1)
        blocks.append(jnp.concatenate([top, bot], axis=0))   # (2h, 2h)
    w_hh = jnp.concatenate(blocks, axis=1)       # (2h, 8h), block-diagonal per gate

    b = interleave((b_ih_f + b_hh_f)[None, :], (b_ih_b + b_hh_b)[None, :])  # (1, 8h)
    return w_ih.astype(jnp.float32), w_hh.astype(jnp.float32), b.astype(jnp.float32)


def pack_params(layer_params, in_size, h_size):
    """Pre-pack all layers ONCE (outside the jitted forward) into stacked arrays."""
    H2 = 2 * h_size
    e_max = max(in_size, H2)
    w_ih_all, w_hh_all, b_all = [], [], []
    for lp in layer_params:
        w_ih, w_hh, b = _pack_layer(lp["fwd"], lp["bwd"], h_size)
        w_ih_all.append(jnp.pad(w_ih, ((0, e_max - w_ih.shape[0]), (0, 0))))
        w_hh_all.append(w_hh)
        b_all.append(b)
    return jnp.stack(w_ih_all), jnp.stack(w_hh_all), jnp.stack(b_all)


@jax.jit
def brnns_char_forward(inp, w_ih_all, w_hh_all, b_all):
    """Pallas forward matching BRNNs_char.forward (eval).  inp: (B, W, C, C_embed)."""
    B, W, C, E = inp.shape
    H2 = w_hh_all.shape[1]
    # Only LSTM "batch" column C-1 reaches the module output (see header comment).
    x = inp[:, :, C - 1, :].reshape(B * W, E).astype(jnp.float32)
    out = _bilstm_stack(x, w_ih_all, w_hh_all, b_all)
    return out.reshape(B, W, H2)


# --------------------------------- pure-JAX reference -----------------------------------
def _lstm_ref(x, w_ih, w_hh, b_ih, b_hh):
    """Unidirectional LSTM, PyTorch semantics, f32-HIGHEST dots.  x: (T, N, E) -> (T, N, h)."""
    h = w_hh.shape[1]
    N = x.shape[1]
    P = jax.lax.Precision.HIGHEST

    def step(carry, x_t):
        h_p, c_p = carry
        gates = (jnp.dot(x_t, w_ih.T, precision=P) +
                 jnp.dot(h_p, w_hh.T, precision=P) + b_ih + b_hh)
        i = jax.nn.sigmoid(gates[:, 0:h])
        f = jax.nn.sigmoid(gates[:, h:2 * h])
        g = jnp.tanh(gates[:, 2 * h:3 * h])
        o = jax.nn.sigmoid(gates[:, 3 * h:4 * h])
        c = f * c_p + i * g
        hh = o * jnp.tanh(c)
        return (hh, c), hh

    init = (jnp.zeros((N, h), jnp.float32), jnp.zeros((N, h), jnp.float32))
    _, hs = jax.lax.scan(step, init, x)
    return hs


def brnns_char_reference(inp, layer_params, h_size):
    """Pure-JAX mirror of the FULL PyTorch forward (all C batch columns)."""
    B, W, C, E = inp.shape
    x = inp.reshape(B * W, C, E).astype(jnp.float32)     # (T=B*W, N=C, E), batch_first=False
    out = x
    for lp in layer_params:
        f = _lstm_ref(out, *lp["fwd"])
        b = _lstm_ref(out[::-1], *lp["bwd"])[::-1]
        out = jnp.concatenate([f, b], axis=-1)            # (T, N, 2h)
    out = out[:, C - 1, :]                                # == output[:, C-1, :]
    return out.reshape(B, W, 2 * h_size)


def init_params(key, in_size, h_size, n_layers):
    """PyTorch nn.LSTM-style init: all params ~ U(-1/sqrt(h), 1/sqrt(h))."""
    layers = []
    bound = 1.0 / np.sqrt(h_size)
    for n in range(n_layers):
        e = in_size if n == 0 else 2 * h_size
        key, *ks = jax.random.split(key, 9)

        def u(kk, shape):
            return jax.random.uniform(kk, shape, jnp.float32, -bound, bound)

        fwd = (u(ks[0], (4 * h_size, e)), u(ks[1], (4 * h_size, h_size)),
               u(ks[2], (4 * h_size,)), u(ks[3], (4 * h_size,)))
        bwd = (u(ks[4], (4 * h_size, e)), u(ks[5], (4 * h_size, h_size)),
               u(ks[6], (4 * h_size,)), u(ks[7], (4 * h_size,)))
        layers.append({"fwd": fwd, "bwd": bwd})
    return layers


if __name__ == "__main__":
    B, W, C, C_embed, h_size = 2, 8, 6, 8, 16      # 8*h_size = 128 -> one full lane width

    key = jax.random.PRNGKey(0)
    k_in, k_p1, k_p2 = jax.random.split(key, 3)
    inp = jax.random.normal(k_in, (B, W, C, C_embed), jnp.float32)

    # Tolerance note: the per-step recurrent dot runs at DEFAULT precision (one bf16 MXU
    # pass) per the perf review; 2e-3 leaves comfortable margin vs the f32 reference.
    RTOL = ATOL = 2e-3

    # n_layers = 1 (module default)
    params1 = init_params(k_p1, C_embed, h_size, n_layers=1)
    packed1 = pack_params(params1, C_embed, h_size)
    out1 = brnns_char_forward(inp, *packed1)
    jax.block_until_ready(out1)
    ref1 = brnns_char_reference(inp, params1, h_size)
    assert out1.shape == (B, W, 2 * h_size)
    err1 = float(np.max(np.abs(np.asarray(out1) - np.asarray(ref1))))
    assert np.allclose(np.asarray(out1), np.asarray(ref1), rtol=RTOL, atol=ATOL), err1

    # stacked case, n_layers = 2 (exercises in-kernel layer fusion + 2h-wide layer-1 input)
    params2 = init_params(k_p2, C_embed, h_size, n_layers=2)
    packed2 = pack_params(params2, C_embed, h_size)
    out2 = brnns_char_forward(inp, *packed2)
    jax.block_until_ready(out2)
    ref2 = brnns_char_reference(inp, params2, h_size)
    err2 = float(np.max(np.abs(np.asarray(out2) - np.asarray(ref2))))
    assert np.allclose(np.asarray(out2), np.asarray(ref2), rtol=RTOL, atol=ATOL), err2

    print("KERNEL_OK")
</pallas_src>

<mosaic_0001>
module attributes {stable_mosaic.version = 11 : i64} {
  func.func @_brnns_char_kernel(%arg0: i32, %arg1: memref<16x8xf32, #tpu.memory_space<vmem>>, %arg2: memref<1x32x128xf32, #tpu.memory_space<vmem>>, %arg3: memref<1x32x128xf32, #tpu.memory_space<vmem>>, %arg4: memref<1x1x128xf32, #tpu.memory_space<vmem>>, %arg5: memref<16x32xf32, #tpu.memory_space<vmem>>, %arg6: memref<16x128xf32, #tpu.memory_space<vmem>>, %arg7: memref<16x32xf32, #tpu.memory_space<vmem>>) attributes {dimension_semantics = [#tpu.dimension_semantics<arbitrary>], iteration_bounds = array<i64: 1>, scalar_prefetch = 0 : i64, scratch_operands = 2 : i64, tpu.core_type = #tpu.core_type<tc>, window_params = [{pipeline_mode = #tpu.pipeline_mode<synchronous>, transform_indices = @transform_0, window_bounds = array<i64: 16, 8>}, {pipeline_mode = #tpu.pipeline_mode<synchronous>, transform_indices = @transform_1, window_bounds = array<i64: 1, 32, 128>}, {pipeline_mode = #tpu.pipeline_mode<synchronous>, transform_indices = @transform_2, window_bounds = array<i64: 1, 32, 128>}, {pipeline_mode = #tpu.pipeline_mode<synchronous>, transform_indices = @transform_3, window_bounds = array<i64: 1, 1, 128>}, {pipeline_mode = #tpu.pipeline_mode<synchronous>, transform_indices = @transform_4, window_bounds = array<i64: 16, 32>}]} {
    %0 = tpu.iota {dimensions = array<i32: 1>} : vector<1x128xi32>
    %1 = tpu.iota {dimensions = array<i32: 1>} : vector<1x32xi32>
    %c32_i32 = arith.constant 32 : i32
    %c0_i32 = arith.constant 0 : i32
    %2 = arith.cmpi eq, %c32_i32, %c0_i32 : i32
    %c1_i32 = arith.constant 1 : i32
    %3 = arith.select %2, %c1_i32, %c32_i32 : i32
    %4 = vector.broadcast %3 : i32 to vector<1x128xi32>
    %5 = arith.remsi %0, %4 : vector<1x128xi32>
    %c0_i32_0 = arith.constant 0 : i32
    %6 = vector.broadcast %c0_i32_0 : i32 to vector<1x128xi32>
    %7 = arith.cmpi ne, %5, %6 : vector<1x128xi32>
    %c0_i32_1 = arith.constant 0 : i32
    %8 = vector.broadcast %c0_i32_1 : i32 to vector<1x128xi32>
    %9 = arith.cmpi slt, %5, %8 : vector<1x128xi32>
    %c0_i32_2 = arith.constant 0 : i32
    %10 = arith.cmpi slt, %3, %c0_i32_2 : i32
    %11 = vector.broadcast %10 : i1 to vector<1x128xi1>
    %12 = vector.broadcast %11 : vector<1x128xi1> to vector<1x128xi1>
    %13 = arith.xori %9, %12 : vector<1x128xi1>
    %14 = arith.andi %13, %7 : vector<1x128xi1>
    %15 = vector.broadcast %3 : i32 to vector<1x128xi32>
    %16 = arith.addi %5, %15 : vector<1x128xi32>
    %17 = arith.select %14, %16, %5 : vector<1x128xi1>, vector<1x128xi32>
    %c16_i32 = arith.constant 16 : i32
    %18 = vector.broadcast %c16_i32 : i32 to vector<1x128xi32>
    %19 = arith.cmpi slt, %17, %18 : vector<1x128xi32>
    %c16_i32_3 = arith.constant 16 : i32
    %20 = vector.broadcast %c16_i32_3 : i32 to vector<1x32xi32>
    %21 = arith.cmpi slt, %1, %20 : vector<1x32xi32>
    %c16_i32_4 = arith.constant 16 : i32
    %22 = vector.broadcast %c16_i32_4 : i32 to vector<1x32xi32>
    %23 = arith.cmpi sge, %1, %22 : vector<1x32xi32>
    %c96_i32 = arith.constant 96 : i32
    %24 = vector.broadcast %c96_i32 : i32 to vector<1x128xi32>
    %25 = arith.cmpi slt, %0, %24 : vector<1x128xi32>
    %cst = arith.constant 5.000000e-01 : f32
    %cst_5 = arith.constant 1.000000e+00 : f32
    %26 = vector.broadcast %cst : f32 to vector<1x128xf32>
    %27 = vector.broadcast %cst_5 : f32 to vector<1x128xf32>
    %28 = arith.select %25, %26, %27 : vector<1x128xi1>, vector<1x128xf32>
    %cst_6 = arith.constant 5.000000e-01 : f32
    %cst_7 = arith.constant 0.000000e+00 : f32
    %29 = vector.broadcast %cst_6 : f32 to vector<1x128xf32>
    %30 = vector.broadcast %cst_7 : f32 to vector<1x128xf32>
    %31 = arith.select %25, %29, %30 : vector<1x128xi1>, vector<1x128xf32>
    %c0 = arith.constant 0 : index
    %c0_8 = arith.constant 0 : index
    %32 = vector.load %arg1[%c0, %c0_8] : memref<16x8xf32, #tpu.memory_space<vmem>>, vector<16x8xf32>
    %c0_9 = arith.constant 0 : index
    %c0_10 = arith.constant 0 : index
    %c0_11 = arith.constant 0 : index
    %33 = vector.load %arg2[%c0_9, %c0_10, %c0_11] : memref<1x32x128xf32, #tpu.memory_space<vmem>>, vector<1x8x128xf32>
    %34 = vector.shape_cast %33 : vector<1x8x128xf32> to vector<8x128xf32>
    %cst_12 = arith.constant dense<0.000000e+00> : vector<16x128xf32>
    %35 = tpu.matmul %32, %34, %cst_12 {dimension_numbers = #tpu.dot_dimension_numbers<[1], [0], [0], [1], [0, 0, 1, 1], [], []>, precision = #tpu.contract_precision<fp32>} : vector<16x8xf32>, vector<8x128xf32>, vector<16x128xf32> -> vector<16x128xf32>
    %c0_13 = arith.constant 0 : index
    %c0_14 = arith.constant 0 : index
    %c0_15 = arith.constant 0 : index
    %36 = vector.load %arg4[%c0_13, %c0_14, %c0_15] : memref<1x1x128xf32, #tpu.memory_space<vmem>>, vector<1x1x128xf32>
    %37 = vector.shape_cast %36 : vector<1x1x128xf32> to vector<1x128xf32>
    %38 = vector.broadcast %37 : vector<1x128xf32> to vector<16x128xf32>
    %39 = arith.addf %35, %38 : vector<16x128xf32>
    %c0_16 = arith.constant 0 : index
    %c0_17 = arith.constant 0 : index
    %40 = vector.load %arg6[%c0_16, %c0_17] : memref<16x128xf32, #tpu.memory_space<vmem>>, vector<16x128xf32>
    tpu.vector_store %arg6[%c0_16, %c0_17], %39 {strides = array<i32>} : memref<16x128xf32, #tpu.memory_space<vmem>>, vector<16x128xf32>,
    %c0_18 = arith.constant 0 : index
    %c0_19 = arith.constant 0 : index
    %c0_20 = arith.constant 0 : index
    %41 = vector.load %arg3[%c0_18, %c0_19, %c0_20] : memref<1x32x128xf32, #tpu.memory_space<vmem>>, vector<1x32x128xf32>
    %42 = vector.shape_cast %41 : vector<1x32x128xf32> to vector<32x128xf32>
    %cst_21 = arith.constant 0.000000e+00 : f32
    %43 = vector.broadcast %cst_21 : f32 to vector<1x32xf32>
    %c0_i32_22 = arith.constant 0 : i32
    %44 = arith.index_cast %c0_i32_22 : i32 to index
    %c0_23 = arith.constant 0 : index
    %45 = vector.load %arg6[%44, %c0_23] : memref<16x128xf32, #tpu.memory_space<vmem>>, vector<1x128xf32>
    %c15_i32 = arith.constant 15 : i32
    %46 = arith.subi %c15_i32, %c0_i32_22 : i32
    %47 = arith.index_cast %46 : i32 to index
    %c0_24 = arith.constant 0 : index
    %48 = vector.load %arg6[%47, %c0_24] : memref<16x128xf32, #tpu.memory_space<vmem>>, vector<1x128xf32>
    %49 = arith.select %19, %45, %48 : vector<1x128xi1>, vector<1x128xf32>
    %cst_25 = arith.constant dense<0.000000e+00> : vector<1x128xf32>
    %50 = tpu.matmul %43, %42, %cst_25 {dimension_numbers = #tpu.dot_dimension_numbers<[1], [0], [0], [1], [0, 0, 1, 1], [], []>} : vector<1x32xf32>, vector<32x128xf32>, vector<1x128xf32> -> vector<1x128xf32>
    %51 = arith.addf %49, %50 : vector<1x128xf32>
    %52 = arith.mulf %51, %28 : vector<1x128xf32>
    %53 = math.tanh %52 : vector<1x128xf32>
    %54 = arith.mulf %53, %28 : vector<1x128xf32>
    %55 = arith.addf %54, %31 : vector<1x128xf32>
    %56 = vector.extract_strided_slice %55 {offsets = [0, 0], sizes = [1, 32], strides = [1, 1]} : vector<1x128xf32> to vector<1x32xf32>
    %57 = vector.extract_strided_slice %55 {offsets = [0, 32], sizes = [1, 32], strides = [1, 1]} : vector<1x128xf32> to vector<1x32xf32>
    %58 = vector.extract_strided_slice %55 {offsets = [0, 64], sizes = [1, 32], strides = [1, 1]} : vector<1x128xf32> to vector<1x32xf32>
    %59 = vector.extract_strided_slice %55 {offsets = [0, 96], sizes = [1, 32], strides = [1, 1]} : vector<1x128xf32> to vector<1x32xf32>
    %60 = arith.mulf %57, %43 : vector<1x32xf32>
    %61 = arith.mulf %56, %59 : vector<1x32xf32>
    %62 = arith.addf %60, %61 : vector<1x32xf32>
    %63 = math.tanh %62 : vector<1x32xf32>
    %64 = arith.mulf %58, %63 : vector<1x32xf32>
    %65 = arith.index_cast %c0_i32_22 : i32 to index
    %c0_26 = arith.constant 0 : index
    %66 = vector.load %arg5[%65, %c0_26] : memref<16x32xf32, #tpu.memory_space<vmem>>, vector<1x32xf32>
    tpu.vector_store %arg5[%65, %c0_26], %64 masked %21 {strides = array<i32>} : memref<16x32xf32, #tpu.memory_space<vmem>>, vector<1x32xf32>, vector<1x32xi1>
    %c15_i32_27 = arith.constant 15 : i32
    %67 = arith.subi %c15_i32_27, %c0_i32_22 : i32
    %68 = arith.index_cast %67 : i32 to index
    %c0_28 = arith.constant 0 : index
    %69 = vector.load %arg5[%68, %c0_28] : memref<16x32xf32, #tpu.memory_space<vmem>>, vector<1x32xf32>
    tpu.vector_store %arg5[%68, %c0_28], %64 masked %23 {strides = array<i32>} : memref<16x32xf32, #tpu.memory_space<vmem>>, vector<1x32xf32>, vector<1x32xi1>
    %c1_i32_29 = arith.constant 1 : i32
    %70 = arith.index_cast %c1_i32_29 : i32 to index
    %c0_30 = arith.constant 0 : index
    %71 = vector.load %arg6[%70, %c0_30] : memref<16x128xf32, #tpu.memory_space<vmem>>, vector<1x128xf32>
    %c15_i32_31 = arith.constant 15 : i32
    %72 = arith.subi %c15_i32_31, %c1_i32_29 : i32
    %73 = arith.index_cast %72 : i32 to index
    %c0_32 = arith.constant 0 : index
    %74 = vector.load %arg6[%73, %c0_32] : memref<16x128xf32, #tpu.memory_space<vmem>>, vector<1x128xf32>
    %75 = arith.select %19, %71, %74 : vector<1x128xi1>, vector<1x128xf32>
    %cst_33 = arith.constant dense<0.000000e+00> : vector<1x128xf32>
    %76 = tpu.matmul %64, %42, %cst_33 {dimension_numbers = #tpu.dot_dimension_numbers<[1], [0], [0], [1], [0, 0, 1, 1], [], []>} : vector<1x32xf32>, vector<32x128xf32>, vector<1x128xf32> -> vector<1x128xf32>
    %77 = arith.addf %75, %76 : vector<1x128xf32>
    %78 = arith.mulf %77, %28 : vector<1x128xf32>
    %79 = math.tanh %78 : vector<1x128xf32>
    %80 = arith.mulf %79, %28 : vector<1x128xf32>
    %81 = arith.addf %80, %31 : vector<1x128xf32>
    %82 = vector.extract_strided_slice %81 {offsets = [0, 0], sizes = [1, 32], strides = [1, 1]} : vector<1x128xf32> to vector<1x32xf32>
    %83 = vector.extract_strided_slice %81 {offsets = [0, 32], sizes = [1, 32], strides = [1, 1]} : vector<1x128xf32> to vector<1x32xf32>
    %84 = vector.extract_strided_slice %81 {offsets = [0, 64], sizes = [1, 32], strides = [1, 1]} : vector<1x128xf32> to vector<1x32xf32>
    %85 = vector.extract_strided_slice %81 {offsets = [0, 96], sizes = [1, 32], strides = [1, 1]} : vector<1x128xf32> to vector<1x32xf32>
    %86 = arith.mulf %83, %62 : vector<1x32xf32>
    %87 = arith.mulf %82, %85 : vector<1x32xf32>
    %88 = arith.addf %86, %87 : vector<1x32xf32>
    %89 = math.tanh %88 : vector<1x32xf32>
    %90 = arith.mulf %84, %89 : vector<1x32xf32>
    %91 = arith.index_cast %c1_i32_29 : i32 to index
    %c0_34 = arith.constant 0 : index
    %92 = vector.load %arg5[%91, %c0_34] : memref<16x32xf32, #tpu.memory_space<vmem>>, vector<1x32xf32>
    tpu.vector_store %arg5[%91, %c0_34], %90 masked %21 {strides = array<i32>} : memref<16x32xf32, #tpu.memory_space<vmem>>, vector<1x32xf32>, vector<1x32xi1>
    %c15_i32_35 = arith.constant 15 : i32
    %93 = arith.subi %c15_i32_35, %c1_i32_29 : i32
    %94 = arith.index_cast %93 : i32 to index
    %c0_36 = arith.constant 0 : index
    %95 = vector.load %arg5[%94, %c0_36] : memref<16x32xf32, #tpu.memory_space<vmem>>, vector<1x32xf32>
    tpu.vector_store %arg5[%94, %c0_36], %90 masked %23 {strides = array<i32>} : memref<16x32xf32, #tpu.memory_space<vmem>>, vector<1x32xf32>, vector<1x32xi1>
    %c2_i32 = arith.constant 2 : i32
    %96 = arith.index_cast %c2_i32 : i32 to index
    %c0_37 = arith.constant 0 : index
    %97 = vector.load %arg6[%96, %c0_37] : memref<16x128xf32, #tpu.memory_space<vmem>>, vector<1x128xf32>
    %c15_i32_38 = arith.constant 15 : i32
    %98 = arith.subi %c15_i32_38, %c2_i32 : i32
    %99 = arith.index_cast %98 : i32 to index
    %c0_39 = arith.constant 0 : index
    %100 = vector.load %arg6[%99, %c0_39] : memref<16x128xf32, #tpu.memory_space<vmem>>, vector<1x128xf32>
    %101 = arith.select %19, %97, %100 : vector<1x128xi1>, vector<1x128xf32>
    %cst_40 = arith.constant dense<0.000000e+00> : vector<1x128xf32>
    %102 = tpu.matmul %90, %42, %cst_40 {dimension_numbers = #tpu.dot_dimension_numbers<[1], [0], [0], [1], [0, 0, 1, 1], [], []>} : vector<1x32xf32>, vector<32x128xf32>, vector<1x128xf32> -> vector<1x128xf32>
    %103 = arith.addf %101, %102 : vector<1x128xf32>
    %104 = arith.mulf %103, %28 : vector<1x128xf32>
    %105 = math.tanh %104 : vector<1x128xf32>
    %106 = arith.mulf %105, %28 : vector<1x128xf32>
    %107 = arith.addf %106, %31 : vector<1x128xf32>
    %108 = vector.extract_strided_slice %107 {offsets = [0, 0], sizes = [1, 32], strides = [1, 1]} : vector<1x128xf32> to vector<1x32xf32>
    %109 = vector.extract_strided_slice %107 {offsets = [0, 32], sizes = [1, 32], strides = [1, 1]} : vector<1x128xf32> to vector<1x32xf32>
    %110 = vector.extract_strided_slice %107 {offsets = [0, 64], sizes = [1, 32], strides = [1, 1]} : vector<1x128xf32> to vector<1x32xf32>
    %111 = vector.extract_strided_slice %107 {offsets = [0, 96], sizes = [1, 32], strides = [1, 1]} : vector<1x128xf32> to vector<1x32xf32>
    %112 = arith.mulf %109, %88 : vector<1x32xf32>
    %113 = arith.mulf %108, %111 : vector<1x32xf32>
    %114 = arith.addf %112, %113 : vector<1x32xf32>
    %115 = math.tanh %114 : vector<1x32xf32>
    %116 = arith.mulf %110, %115 : vector<1x32xf32>
    %117 = arith.index_cast %c2_i32 : i32 to index
    %c0_41 = arith.constant 0 : index
    %118 = vector.load %arg5[%117, %c0_41] : memref<16x32xf32, #tpu.memory_space<vmem>>, vector<1x32xf32>
    tpu.vector_store %arg5[%117, %c0_41], %116 masked %21 {strides = array<i32>} : memref<16x32xf32, #tpu.memory_space<vmem>>, vector<1x32xf32>, vector<1x32xi1>
    %c15_i32_42 = arith.constant 15 : i32
    %119 = arith.subi %c15_i32_42, %c2_i32 : i32
    %120 = arith.index_cast %119 : i32 to index
    %c0_43 = arith.constant 0 : index
    %121 = vector.load %arg5[%120, %c0_43] : memref<16x32xf32, #tpu.memory_space<vmem>>, vector<1x32xf32>
    tpu.vector_store %arg5[%120, %c0_43], %116 masked %23 {strides = array<i32>} : memref<16x32xf32, #tpu.memory_space<vmem>>, vector<1x32xf32>, vector<1x32xi1>
    %c3_i32 = arith.constant 3 : i32
    %122 = arith.index_cast %c3_i32 : i32 to index
    %c0_44 = arith.constant 0 : index
    %123 = vector.load %arg6[%122, %c0_44] : memref<16x128xf32, #tpu.memory_space<vmem>>, vector<1x128xf32>
    %c15_i32_45 = arith.constant 15 : i32
    %124 = arith.subi %c15_i32_45, %c3_i32 : i32
    %125 = arith.index_cast %124 : i32 to index
    %c0_46 = arith.constant 0 : index
    %126 = vector.load %arg6[%125, %c0_46] : memref<16x128xf32, #tpu.memory_space<vmem>>, vector<1x128xf32>
    %127 = arith.select %19, %123, %126 : vector<1x128xi1>, vector<1x128xf32>
    %cst_47 = arith.constant dense<0.000000e+00> : vector<1x128xf32>
    %128 = tpu.matmul %116, %42, %cst_47 {dimension_numbers = #tpu.dot_dimension_numbers<[1], [0], [0], [1], [0, 0, 1, 1], [], []>} : vector<1x32xf32>, vector<32x128xf32>, vector<1x128xf32> -> vector<1x128xf32>
    %129 = arith.addf %127, %128 : vector<1x128xf32>
    %130 = arith.mulf %129, %28 : vector<1x128xf32>
    %131 = math.tanh %130 : vector<1x128xf32>
    %132 = arith.mulf %131, %28 : vector<1x128xf32>
    %133 = arith.addf %132, %31 : vector<1x128xf32>
    %134 = vector.extract_strided_slice %133 {offsets = [0, 0], sizes = [1, 32], strides = [1, 1]} : vector<1x128xf32> to vector<1x32xf32>
    %135 = vector.extract_strided_slice %133 {offsets = [0, 32], sizes = [1, 32], strides = [1, 1]} : vector<1x128xf32> to vector<1x32xf32>
    %136 = vector.extract_strided_slice %133 {offsets = [0, 64], sizes = [1, 32], strides = [1, 1]} : vector<1x128xf32> to vector<1x32xf32>
    %137 = vector.extract_strided_slice %133 {offsets = [0, 96], sizes = [1, 32], strides = [1, 1]} : vector<1x128xf32> to vector<1x32xf32>
    %138 = arith.mulf %135, %114 : vector<1x32xf32>
    %139 = arith.mulf %134, %137 : vector<1x32xf32>
    %140 = arith.addf %138, %139 : vector<1x32xf32>
    %141 = math.tanh %140 : vector<1x32xf32>
    %142 = arith.mulf %136, %141 : vector<1x32xf32>
    %143 = arith.index_cast %c3_i32 : i32 to index
    %c0_48 = arith.constant 0 : index
    %144 = vector.load %arg5[%143, %c0_48] : memref<16x32xf32, #tpu.memory_space<vmem>>, vector<1x32xf32>
    tpu.vector_store %arg5[%143, %c0_48], %142 masked %21 {strides = array<i32>} : memref<16x32xf32, #tpu.memory_space<vmem>>, vector<1x32xf32>, vector<1x32xi1>
    %c15_i32_49 = arith.constant 15 : i32
    %145 = arith.subi %c15_i32_49, %c3_i32 : i32
    %146 = arith.index_cast %145 : i32 to index
    %c0_50 = arith.constant 0 : index
    %147 = vector.load %arg5[%146, %c0_50] : memref<16x32xf32, #tpu.memory_space<vmem>>, vector<1x32xf32>
    tpu.vector_store %arg5[%146, %c0_50], %142 masked %23 {strides = array<i32>} : memref<16x32xf32, #tpu.memory_space<vmem>>, vector<1x32xf32>, vector<1x32xi1>
    %c4_i32 = arith.constant 4 : i32
    %148 = arith.index_cast %c4_i32 : i32 to index
    %c0_51 = arith.constant 0 : index
    %149 = vector.load %arg6[%148, %c0_51] : memref<16x128xf32, #tpu.memory_space<vmem>>, vector<1x128xf32>
    %c15_i32_52 = arith.constant 15 : i32
    %150 = arith.subi %c15_i32_52, %c4_i32 : i32
    %151 = arith.index_cast %150 : i32 to index
    %c0_53 = arith.constant 0 : index
    %152 = vector.load %arg6[%151, %c0_53] : memref<16x128xf32, #tpu.memory_space<vmem>>, vector<1x128xf32>
    %153 = arith.select %19, %149, %152 : vector<1x128xi1>, vector<1x128xf32>
    %cst_54 = arith.constant dense<0.000000e+00> : vector<1x128xf32>
    %154 = tpu.matmul %142, %42, %cst_54 {dimension_numbers = #tpu.dot_dimension_numbers<[1], [0], [0], [1], [0, 0, 1, 1], [], []>} : vector<1x32xf32>, vector<32x128xf32>, vector<1x128xf32> -> vector<1x128xf32>
    %155 = arith.addf %153, %154 : vector<1x128xf32>
    %156 = arith.mulf %155, %28 : vector<1x128xf32>
    %157 = math.tanh %156 : vector<1x128xf32>
    %158 = arith.mulf %157, %28 : vector<1x128xf32>
    %159 = arith.addf %158, %31 : vector<1x128xf32>
    %160 = vector.extract_strided_slice %159 {offsets = [0, 0], sizes = [1, 32], strides = [1, 1]} : vector<1x128xf32> to vector<1x32xf32>
    %161 = vector.extract_strided_slice %159 {offsets = [0, 32], sizes = [1, 32], strides = [1, 1]} : vector<1x128xf32> to vector<1x32xf32>
    %162 = vector.extract_strided_slice %159 {offsets = [0, 64], sizes = [1, 32], strides = [1, 1]} : vector<1x128xf32> to vector<1x32xf32>
    %163 = vector.extract_strided_slice %159 {offsets = [0, 96], sizes = [1, 32], strides = [1, 1]} : vector<1x128xf32> to vector<1x32xf32>
    %164 = arith.mulf %161, %140 : vector<1x32xf32>
    %165 = arith.mulf %160, %163 : vector<1x32xf32>
    %166 = arith.addf %164, %165 : vector<1x32xf32>
    %167 = math.tanh %166 : vector<1x32xf32>
    %168 = arith.mulf %162, %167 : vector<1x32xf32>
    %169 = arith.index_cast %c4_i32 : i32 to index
    %c0_55 = arith.constant 0 : index
    %170 = vector.load %arg5[%169, %c0_55] : memref<16x32xf32, #tpu.memory_space<vmem>>, vector<1x32xf32>
    tpu.vector_store %arg5[%169, %c0_55], %168 masked %21 {strides = array<i32>} : memref<16x32xf32, #tpu.memory_space<vmem>>, vector<1x32xf32>, vector<1x32xi1>
    %c15_i32_56 = arith.constant 15 : i32
    %171 = arith.subi %c15_i32_56, %c4_i32 : i32
    %172 = arith.index_cast %171 : i32 to index
    %c0_57 = arith.constant 0 : index
    %173 = vector.load %arg5[%172, %c0_57] : memref<16x32xf32, #tpu.memory_space<vmem>>, vector<1x32xf32>
    tpu.vector_store %arg5[%172, %c0_57], %168 masked %23 {strides = array<i32>} : memref<16x32xf32, #tpu.memory_space<vmem>>, vector<1x32xf32>, vector<1x32xi1>
    %c5_i32 = arith.constant 5 : i32
    %174 = arith.index_cast %c5_i32 : i32 to index
    %c0_58 = arith.constant 0 : index
    %175 = vector.load %arg6[%174, %c0_58] : memref<16x128xf32, #tpu.memory_space<vmem>>, vector<1x128xf32>
    %c15_i32_59 = arith.constant 15 : i32
    %176 = arith.subi %c15_i32_59, %c5_i32 : i32
    %177 = arith.index_cast %176 : i32 to index
    %c0_60 = arith.constant 0 : index
    %178 = vector.load %arg6[%177, %c0_60] : memref<16x128xf32, #tpu.memory_space<vmem>>, vector<1x128xf32>
    %179 = arith.select %19, %175, %178 : vector<1x128xi1>, vector<1x128xf32>
    %cst_61 = arith.constant dense<0.000000e+00> : vector<1x128xf32>
    %180 = tpu.matmul %168, %42, %cst_61 {dimension_numbers = #tpu.dot_dimension_numbers<[1], [0], [0], [1], [0, 0, 1, 1], [], []>} : vector<1x32xf32>, vector<32x128xf32>, vector<1x128xf32> -> vector<1x128xf32>
    %181 = arith.addf %179, %180 : vector<1x128xf32>
    %182 = arith.mulf %181, %28 : vector<1x128xf32>
    %183 = math.tanh %182 : vector<1x128xf32>
    %184 = arith.mulf %183, %28 : vector<1x128xf32>
    %185 = arith.addf %184, %31 : vector<1x128xf32>
    %186 = vector.extract_strided_slice %185 {offsets = [0, 0], sizes = [1, 32], strides = [1, 1]} : vector<1x128xf32> to vector<1x32xf32>
    %187 = vector.extract_strided_slice %185 {offsets = [0, 32], sizes = [1, 32], strides = [1, 1]} : vector<1x128xf32> to vector<1x32xf32>
    %188 = vector.extract_strided_slice %185 {offsets = [0, 64], sizes = [1, 32], strides = [1, 1]} : vector<1x128xf32> to vector<1x32xf32>
    %189 = vector.extract_strided_slice %185 {offsets = [0, 96], sizes = [1, 32], strides = [1, 1]} : vector<1x128xf32> to vector<1x32xf32>
    %190 = arith.mulf %187, %166 : vector<1x32xf32>
    %191 = arith.mulf %186, %189 : vector<1x32xf32>
    %192 = arith.addf %190, %191 : vector<1x32xf32>
    %193 = math.tanh %192 : vector<1x32xf32>
    %194 = arith.mulf %188, %193 : vector<1x32xf32>
    %195 = arith.index_cast %c5_i32 : i32 to index
    %c0_62 = arith.constant 0 : index
    %196 = vector.load %arg5[%195, %c0_62] : memref<16x32xf32, #tpu.memory_space<vmem>>, vector<1x32xf32>
    tpu.vector_store %arg5[%195, %c0_62], %194 masked %21 {strides = array<i32>} : memref<16x32xf32, #tpu.memory_space<vmem>>, vector<1x32xf32>, vector<1x32xi1>
    %c15_i32_63 = arith.constant 15 : i32
    %197 = arith.subi %c15_i32_63, %c5_i32 : i32
    %198 = arith.index_cast %197 : i32 to index
    %c0_64 = arith.constant 0 : index
    %199 = vector.load %arg5[%198, %c0_64] : memref<16x32xf32, #tpu.memory_space<vmem>>, vector<1x32xf32>
    tpu.vector_store %arg5[%198, %c0_64], %194 masked %23 {strides = array<i32>} : memref<16x32xf32, #tpu.memory_space<vmem>>, vector<1x32xf32>, vector<1x32xi1>
    %c6_i32 = arith.constant 6 : i32
    %200 = arith.index_cast %c6_i32 : i32 to index
    %c0_65 = arith.constant 0 : index
    %201 = vector.load %arg6[%200, %c0_65] : memref<16x128xf32, #tpu.memory_space<vmem>>, vector<1x128xf32>
    %c15_i32_66 = arith.constant 15 : i32
    %202 = arith.subi %c15_i32_66, %c6_i32 : i32
    %203 = arith.index_cast %202 : i32 to index
    %c0_67 = arith.constant 0 : index
    %204 = vector.load %arg6[%203, %c0_67] : memref<16x128xf32, #tpu.memory_space<vmem>>, vector<1x128xf32>
    %205 = arith.select %19, %201, %204 : vector<1x128xi1>, vector<1x128xf32>
    %cst_68 = arith.constant dense<0.000000e+00> : vector<1x128xf32>
    %206 = tpu.matmul %194, %42, %cst_68 {dimension_numbers = #tpu.dot_dimension_numbers<[1], [0], [0], [1], [0, 0, 1, 1], [], []>} : vector<1x32xf32>, vector<32x128xf32>, vector<1x128xf32> -> vector<1x128xf32>
    %207 = arith.addf %205, %206 : vector<1x128xf32>
    %208 = arith.mulf %207, %28 : vector<1x128xf32>
    %209 = math.tanh %208 : vector<1x128xf32>
    %210 = arith.mulf %209, %28 : vector<1x128xf32>
    %211 = arith.addf %210, %31 : vector<1x128xf32>
    %212 = vector.extract_strided_slice %211 {offsets = [0, 0], sizes = [1, 32], strides = [1, 1]} : vector<1x128xf32> to vector<1x32xf32>
    %213 = vector.extract_strided_slice %211 {offsets = [0, 32], sizes = [1, 32], strides = [1, 1]} : vector<1x128xf32> to vector<1x32xf32>
    %214 = vector.extract_strided_slice %211 {offsets = [0, 64], sizes = [1, 32], strides = [1, 1]} : vector<1x128xf32> to vector<1x32xf32>
    %215 = vector.extract_strided_slice %211 {offsets = [0, 96], sizes = [1, 32], strides = [1, 1]} : vector<1x128xf32> to vector<1x32xf32>
    %216 = arith.mulf %213, %192 : vector<1x32xf32>
    %217 = arith.mulf %212, %215 : vector<1x32xf32>
    %218 = arith.addf %216, %217 : vector<1x32xf32>
    %219 = math.tanh %218 : vector<1x32xf32>
    %220 = arith.mulf %214, %219 : vector<1x32xf32>
    %221 = arith.index_cast %c6_i32 : i32 to index
    %c0_69 = arith.constant 0 : index
    %222 = vector.load %arg5[%221, %c0_69] : memref<16x32xf32, #tpu.memory_space<vmem>>, vector<1x32xf32>
    tpu.vector_store %arg5[%221, %c0_69], %220 masked %21 {strides = array<i32>} : memref<16x32xf32, #tpu.memory_space<vmem>>, vector<1x32xf32>, vector<1x32xi1>
    %c15_i32_70 = arith.constant 15 : i32
    %223 = arith.subi %c15_i32_70, %c6_i32 : i32
    %224 = arith.index_cast %223 : i32 to index
    %c0_71 = arith.constant 0 : index
    %225 = vector.load %arg5[%224, %c0_71] : memref<16x32xf32, #tpu.memory_space<vmem>>, vector<1x32xf32>
    tpu.vector_store %arg5[%224, %c0_71], %220 masked %23 {strides = array<i32>} : memref<16x32xf32, #tpu.memory_space<vmem>>, vector<1x32xf32>, vector<1x32xi1>
    %c7_i32 = arith.constant 7 : i32
    %226 = arith.index_cast %c7_i32 : i32 to index
    %c0_72 = arith.constant 0 : index
    %227 = vector.load %arg6[%226, %c0_72] : memref<16x128xf32, #tpu.memory_space<vmem>>, vector<1x128xf32>
    %c15_i32_73 = arith.constant 15 : i32
    %228 = arith.subi %c15_i32_73, %c7_i32 : i32
    %229 = arith.index_cast %228 : i32 to index
    %c0_74 = arith.constant 0 : index
    %230 = vector.load %arg6[%229, %c0_74] : memref<16x128xf32, #tpu.memory_space<vmem>>, vector<1x128xf32>
    %231 = arith.select %19, %227, %230 : vector<1x128xi1>, vector<1x128xf32>
    %cst_75 = arith.constant dense<0.000000e+00> : vector<1x128xf32>
    %232 = tpu.matmul %220, %42, %cst_75 {dimension_numbers = #tpu.dot_dimension_numbers<[1], [0], [0], [1], [0, 0, 1, 1], [], []>} : vector<1x32xf32>, vector<32x128xf32>, vector<1x128xf32> -> vector<1x128xf32>
    %233 = arith.addf %231, %232 : vector<1x128xf32>
    %234 = arith.mulf %233, %28 : vector<1x128xf32>
    %235 = math.tanh %234 : vector<1x128xf32>
    %236 = arith.mulf %235, %28 : vector<1x128xf32>
    %237 = arith.addf %236, %31 : vector<1x128xf32>
    %238 = vector.extract_strided_slice %237 {offsets = [0, 0], sizes = [1, 32], strides = [1, 1]} : vector<1x128xf32> to vector<1x32xf32>
    %239 = vector.extract_strided_slice %237 {offsets = [0, 32], sizes = [1, 32], strides = [1, 1]} : vector<1x128xf32> to vector<1x32xf32>
    %240 = vector.extract_strided_slice %237 {offsets = [0, 64], sizes = [1, 32], strides = [1, 1]} : vector<1x128xf32> to vector<1x32xf32>
    %241 = vector.extract_strided_slice %237 {offsets = [0, 96], sizes = [1, 32], strides = [1, 1]} : vector<1x128xf32> to vector<1x32xf32>
    %242 = arith.mulf %239, %218 : vector<1x32xf32>
    %243 = arith.mulf %238, %241 : vector<1x32xf32>
    %244 = arith.addf %242, %243 : vector<1x32xf32>
    %245 = math.tanh %244 : vector<1x32xf32>
    %246 = arith.mulf %240, %245 : vector<1x32xf32>
    %247 = arith.index_cast %c7_i32 : i32 to index
    %c0_76 = arith.constant 0 : index
    %248 = vector.load %arg5[%247, %c0_76] : memref<16x32xf32, #tpu.memory_space<vmem>>, vector<1x32xf32>
    tpu.vector_store %arg5[%247, %c0_76], %246 masked %21 {strides = array<i32>} : memref<16x32xf32, #tpu.memory_space<vmem>>, vector<1x32xf32>, vector<1x32xi1>
    %c15_i32_77 = arith.constant 15 : i32
    %249 = arith.subi %c15_i32_77, %c7_i32 : i32
    %250 = arith.index_cast %249 : i32 to index
    %c0_78 = arith.constant 0 : index
    %251 = vector.load %arg5[%250, %c0_78] : memref<16x32xf32, #tpu.memory_space<vmem>>, vector<1x32xf32>
    tpu.vector_store %arg5[%250, %c0_78], %246 masked %23 {strides = array<i32>} : memref<16x32xf32, #tpu.memory_space<vmem>>, vector<1x32xf32>, vector<1x32xi1>
    %c8_i32 = arith.constant 8 : i32
    %252 = arith.index_cast %c8_i32 : i32 to index
    %c0_79 = arith.constant 0 : index
    %253 = vector.load %arg6[%252, %c0_79] : memref<16x128xf32, #tpu.memory_space<vmem>>, vector<1x128xf32>
    %c15_i32_80 = arith.constant 15 : i32
    %254 = arith.subi %c15_i32_80, %c8_i32 : i32
    %255 = arith.index_cast %254 : i32 to index
    %c0_81 = arith.constant 0 : index
    %256 = vector.load %arg6[%255, %c0_81] : memref<16x128xf32, #tpu.memory_space<vmem>>, vector<1x128xf32>
    %257 = arith.select %19, %253, %256 : vector<1x128xi1>, vector<1x128xf32>
    %cst_82 = arith.constant dense<0.000000e+00> : vector<1x128xf32>
    %258 = tpu.matmul %246, %42, %cst_82 {dimension_numbers = #tpu.dot_dimension_numbers<[1], [0], [0], [1], [0, 0, 1, 1], [], []>} : vector<1x32xf32>, vector<32x128xf32>, vector<1x128xf32> -> vector<1x128xf32>
    %259 = arith.addf %257, %258 : vector<1x128xf32>
    %260 = arith.mulf %259, %28 : vector<1x128xf32>
    %261 = math.tanh %260 : vector<1x128xf32>
    %262 = arith.mulf %261, %28 : vector<1x128xf32>
    %263 = arith.addf %262, %31 : vector<1x128xf32>
    %264 = vector.extract_strided_slice %263 {offsets = [0, 0], sizes = [1, 32], strides = [1, 1]} : vector<1x128xf32> to vector<1x32xf32>
    %265 = vector.extract_strided_slice %263 {offsets = [0, 32], sizes = [1, 32], strides = [1, 1]} : vector<1x128xf32> to vector<1x32xf32>
    %266 = vector.extract_strided_slice %263 {offsets = [0, 64], sizes = [1, 32], strides = [1, 1]} : vector<1x128xf32> to vector<1x32xf32>
    %267 = vector.extract_strided_slice %263 {offsets = [0, 96], sizes = [1, 32], strides = [1, 1]} : vector<1x128xf32> to vector<1x32xf32>
    %268 = arith.mulf %265, %244 : vector<1x32xf32>
    %269 = arith.mulf %264, %267 : vector<1x32xf32>
    %270 = arith.addf %268, %269 : vector<1x32xf32>
    %271 = math.tanh %270 : vector<1x32xf32>
    %272 = arith.mulf %266, %271 : vector<1x32xf32>
    %273 = arith.index_cast %c8_i32 : i32 to index
    %c0_83 = arith.constant 0 : index
    %274 = vector.load %arg5[%273, %c0_83] : memref<16x32xf32, #tpu.memory_space<vmem>>, vector<1x32xf32>
    tpu.vector_store %arg5[%273, %c0_83], %272 masked %21 {strides = array<i32>} : memref<16x32xf32, #tpu.memory_space<vmem>>, vector<1x32xf32>, vector<1x32xi1>
    %c15_i32_84 = arith.constant 15 : i32
    %275 = arith.subi %c15_i32_84, %c8_i32 : i32
    %276 = arith.index_cast %275 : i32 to index
    %c0_85 = arith.constant 0 : index
    %277 = vector.load %arg5[%276, %c0_85] : memref<16x32xf32, #tpu.memory_space<vmem>>, vector<1x32xf32>
    tpu.vector_store %arg5[%276, %c0_85], %272 masked %23 {strides = array<i32>} : memref<16x32xf32, #tpu.memory_space<vmem>>, vector<1x32xf32>, vector<1x32xi1>
    %c9_i32 = arith.constant 9 : i32
    %278 = arith.index_cast %c9_i32 : i32 to index
    %c0_86 = arith.constant 0 : index
    %279 = vector.load %arg6[%278, %c0_86] : memref<16x128xf32, #tpu.memory_space<vmem>>, vector<1x128xf32>
    %c15_i32_87 = arith.constant 15 : i32
    %280 = arith.subi %c15_i32_87, %c9_i32 : i32
    %281 = arith.index_cast %280 : i32 to index
    %c0_88 = arith.constant 0 : index
    %282 = vector.load %arg6[%281, %c0_88] : memref<16x128xf32, #tpu.memory_space<vmem>>, vector<1x128xf32>
    %283 = arith.select %19, %279, %282 : vector<1x128xi1>, vector<1x128xf32>
    %cst_89 = arith.constant dense<0.000000e+00> : vector<1x128xf32>
    %284 = tpu.matmul %272, %42, %cst_89 {dimension_numbers = #tpu.dot_dimension_numbers<[1], [0], [0], [1], [0, 0, 1, 1], [], []>} : vector<1x32xf32>, vector<32x128xf32>, vector<1x128xf32> -> vector<1x128xf32>
    %285 = arith.addf %283, %284 : vector<1x128xf32>
    %286 = arith.mulf %285, %28 : vector<1x128xf32>
    %287 = math.tanh %286 : vector<1x128xf32>
    %288 = arith.mulf %287, %28 : vector<1x128xf32>
    %289 = arith.addf %288, %31 : vector<1x128xf32>
    %290 = vector.extract_strided_slice %289 {offsets = [0, 0], sizes = [1, 32], strides = [1, 1]} : vector<1x128xf32> to vector<1x32xf32>
    %291 = vector.extract_strided_slice %289 {offsets = [0, 32], sizes = [1, 32], strides = [1, 1]} : vector<1x128xf32> to vector<1x32xf32>
    %292 = vector.extract_strided_slice %289 {offsets = [0, 64], sizes = [1, 32], strides = [1, 1]} : vector<1x128xf32> to vector<1x32xf32>
    %293 = vector.extract_strided_slice %289 {offsets = [0, 96], sizes = [1, 32], strides = [1, 1]} : vector<1x128xf32> to vector<1x32xf32>
    %294 = arith.mulf %291, %270 : vector<1x32xf32>
    %295 = arith.mulf %290, %293 : vector<1x32xf32>
    %296 = arith.addf %294, %295 : vector<1x32xf32>
    %297 = math.tanh %296 : vector<1x32xf32>
    %298 = arith.mulf %292, %297 : vector<1x32xf32>
    %299 = arith.index_cast %c9_i32 : i32 to index
    %c0_90 = arith.constant 0 : index
    %300 = vector.load %arg5[%299, %c0_90] : memref<16x32xf32, #tpu.memory_space<vmem>>, vector<1x32xf32>
    tpu.vector_store %arg5[%299, %c0_90], %298 masked %21 {strides = array<i32>} : memref<16x32xf32, #tpu.memory_space<vmem>>, vector<1x32xf32>, vector<1x32xi1>
    %c15_i32_91 = arith.constant 15 : i32
    %301 = arith.subi %c15_i32_91, %c9_i32 : i32
    %302 = arith.index_cast %301 : i32 to index
    %c0_92 = arith.constant 0 : index
    %303 = vector.load %arg5[%302, %c0_92] : memref<16x32xf32, #tpu.memory_space<vmem>>, vector<1x32xf32>
    tpu.vector_store %arg5[%302, %c0_92], %298 masked %23 {strides = array<i32>} : memref<16x32xf32, #tpu.memory_space<vmem>>, vector<1x32xf32>, vector<1x32xi1>
    %c10_i32 = arith.constant 10 : i32
    %304 = arith.index_cast %c10_i32 : i32 to index
    %c0_93 = arith.constant 0 : index
    %305 = vector.load %arg6[%304, %c0_93] : memref<16x128xf32, #tpu.memory_space<vmem>>, vector<1x128xf32>
    %c15_i32_94 = arith.constant 15 : i32
    %306 = arith.subi %c15_i32_94, %c10_i32 : i32
    %307 = arith.index_cast %306 : i32 to index
    %c0_95 = arith.constant 0 : index
    %308 = vector.load %arg6[%307, %c0_95] : memref<16x128xf32, #tpu.memory_space<vmem>>, vector<1x128xf32>
    %309 = arith.select %19, %305, %308 : vector<1x128xi1>, vector<1x128xf32>
    %cst_96 = arith.constant dense<0.000000e+00> : vector<1x128xf32>
    %310 = tpu.matmul %298, %42, %cst_96 {dimension_numbers = #tpu.dot_dimension_numbers<[1], [0], [0], [1], [0, 0, 1, 1], [], []>} : vector<1x32xf32>, vector<32x128xf32>, vector<1x128xf32> -> vector<1x128xf32>
    %311 = arith.addf %309, %310 : vector<1x128xf32>
    %312 = arith.mulf %311, %28 : vector<1x128xf32>
    %313 = math.tanh %312 : vector<1x128xf32>
    %314 = arith.mulf %313, %28 : vector<1x128xf32>
    %315 = arith.addf %314, %31 : vector<1x128xf32>
    %316 = vector.extract_strided_slice %315 {offsets = [0, 0], sizes = [1, 32], strides = [1, 1]} : vector<1x128xf32> to vector<1x32xf32>
    %317 = vector.extract_strided_slice %315 {offsets = [0, 32], sizes = [1, 32], strides = [1, 1]} : vector<1x128xf32> to vector<1x32xf32>
    %318 = vector.extract_strided_slice %315 {offsets = [0, 64], sizes = [1, 32], strides = [1, 1]} : vector<1x128xf32> to vector<1x32xf32>
    %319 = vector.extract_strided_slice %315 {offsets = [0, 96], sizes = [1, 32], strides = [1, 1]} : vector<1x128xf32> to vector<1x32xf32>
    %320 = arith.mulf %317, %296 : vector<1x32xf32>
    %321 = arith.mulf %316, %319 : vector<1x32xf32>
    %322 = arith.addf %320, %321 : vector<1x32xf32>
    %323 = math.tanh %322 : vector<1x32xf32>
    %324 = arith.mulf %318, %323 : vector<1x32xf32>
    %325 = arith.index_cast %c10_i32 : i32 to index
    %c0_97 = arith.constant 0 : index
    %326 = vector.load %arg5[%325, %c0_97] : memref<16x32xf32, #tpu.memory_space<vmem>>, vector<1x32xf32>
    tpu.vector_store %arg5[%325, %c0_97], %324 masked %21 {strides = array<i32>} : memref<16x32xf32, #tpu.memory_space<vmem>>, vector<1x32xf32>, vector<1x32xi1>
    %c15_i32_98 = arith.constant 15 : i32
    %327 = arith.subi %c15_i32_98, %c10_i32 : i32
    %328 = arith.index_cast %327 : i32 to index
    %c0_99 = arith.constant 0 : index
    %329 = vector.load %arg5[%328, %c0_99] : memref<16x32xf32, #tpu.memory_space<vmem>>, vector<1x32xf32>
    tpu.vector_store %arg5[%328, %c0_99], %324 masked %23 {strides = array<i32>} : memref<16x32xf32, #tpu.memory_space<vmem>>, vector<1x32xf32>, vector<1x32xi1>
    %c11_i32 = arith.constant 11 : i32
    %330 = arith.index_cast %c11_i32 : i32 to index
    %c0_100 = arith.constant 0 : index
    %331 = vector.load %arg6[%330, %c0_100] : memref<16x128xf32, #tpu.memory_space<vmem>>, vector<1x128xf32>
    %c15_i32_101 = arith.constant 15 : i32
    %332 = arith.subi %c15_i32_101, %c11_i32 : i32
    %333 = arith.index_cast %332 : i32 to index
    %c0_102 = arith.constant 0 : index
    %334 = vector.load %arg6[%333, %c0_102] : memref<16x128xf32, #tpu.memory_space<vmem>>, vector<1x128xf32>
    %335 = arith.select %19, %331, %334 : vector<1x128xi1>, vector<1x128xf32>
    %cst_103 = arith.constant dense<0.000000e+00> : vector<1x128xf32>
    %336 = tpu.matmul %324, %42, %cst_103 {dimension_numbers = #tpu.dot_dimension_numbers<[1], [0], [0], [1], [0, 0, 1, 1], [], []>} : vector<1x32xf32>, vector<32x128xf32>, vector<1x128xf32> -> vector<1x128xf32>
    %337 = arith.addf %335, %336 : vector<1x128xf32>
    %338 = arith.mulf %337, %28 : vector<1x128xf32>
    %339 = math.tanh %338 : vector<1x128xf32>
    %340 = arith.mulf %339, %28 : vector<1x128xf32>
    %341 = arith.addf %340, %31 : vector<1x128xf32>
    %342 = vector.extract_strided_slice %341 {offsets = [0, 0], sizes = [1, 32], strides = [1, 1]} : vector<1x128xf32> to vector<1x32xf32>
    %343 = vector.extract_strided_slice %341 {offsets = [0, 32], sizes = [1, 32], strides = [1, 1]} : vector<1x128xf32> to vector<1x32xf32>
    %344 = vector.extract_strided_slice %341 {offsets = [0, 64], sizes = [1, 32], strides = [1, 1]} : vector<1x128xf32> to vector<1x32xf32>
    %345 = vector.extract_strided_slice %341 {offsets = [0, 96], sizes = [1, 32], strides = [1, 1]} : vector<1x128xf32> to vector<1x32xf32>
    %346 = arith.mulf %343, %322 : vector<1x32xf32>
    %347 = arith.mulf %342, %345 : vector<1x32xf32>
    %348 = arith.addf %346, %347 : vector<1x32xf32>
    %349 = math.tanh %348 : vector<1x32xf32>
    %350 = arith.mulf %344, %349 : vector<1x32xf32>
    %351 = arith.index_cast %c11_i32 : i32 to index
    %c0_104 = arith.constant 0 : index
    %352 = vector.load %arg5[%351, %c0_104] : memref<16x32xf32, #tpu.memory_space<vmem>>, vector<1x32xf32>
    tpu.vector_store %arg5[%351, %c0_104], %350 masked %21 {strides = array<i32>} : memref<16x32xf32, #tpu.memory_space<vmem>>, vector<1x32xf32>, vector<1x32xi1>
    %c15_i32_105 = arith.constant 15 : i32
    %353 = arith.subi %c15_i32_105, %c11_i32 : i32
    %354 = arith.index_cast %353 : i32 to index
    %c0_106 = arith.constant 0 : index
    %355 = vector.load %arg5[%354, %c0_106] : memref<16x32xf32, #tpu.memory_space<vmem>>, vector<1x32xf32>
    tpu.vector_store %arg5[%354, %c0_106], %350 masked %23 {strides = array<i32>} : memref<16x32xf32, #tpu.memory_space<vmem>>, vector<1x32xf32>, vector<1x32xi1>
    %c12_i32 = arith.constant 12 : i32
    %356 = arith.index_cast %c12_i32 : i32 to index
    %c0_107 = arith.constant 0 : index
    %357 = vector.load %arg6[%356, %c0_107] : memref<16x128xf32, #tpu.memory_space<vmem>>, vector<1x128xf32>
    %c15_i32_108 = arith.constant 15 : i32
    %358 = arith.subi %c15_i32_108, %c12_i32 : i32
    %359 = arith.index_cast %358 : i32 to index
    %c0_109 = arith.constant 0 : index
    %360 = vector.load %arg6[%359, %c0_109] : memref<16x128xf32, #tpu.memory_space<vmem>>, vector<1x128xf32>
    %361 = arith.select %19, %357, %360 : vector<1x128xi1>, vector<1x128xf32>
    %cst_110 = arith.constant dense<0.000000e+00> : vector<1x128xf32>
    %362 = tpu.matmul %350, %42, %cst_110 {dimension_numbers = #tpu.dot_dimension_numbers<[1], [0], [0], [1], [0, 0, 1, 1], [], []>} : vector<1x32xf32>, vector<32x128xf32>, vector<1x128xf32> -> vector<1x128xf32>
    %363 = arith.addf %361, %362 : vector<1x128xf32>
    %364 = arith.mulf %363, %28 : vector<1x128xf32>
    %365 = math.tanh %364 : vector<1x128xf32>
    %366 = arith.mulf %365, %28 : vector<1x128xf32>
    %367 = arith.addf %366, %31 : vector<1x128xf32>
    %368 = vector.extract_strided_slice %367 {offsets = [0, 0], sizes = [1, 32], strides = [1, 1]} : vector<1x128xf32> to vector<1x32xf32>
    %369 = vector.extract_strided_slice %367 {offsets = [0, 32], sizes = [1, 32], strides = [1, 1]} : vector<1x128xf32> to vector<1x32xf32>
    %370 = vector.extract_strided_slice %367 {offsets = [0, 64], sizes = [1, 32], strides = [1, 1]} : vector<1x128xf32> to vector<1x32xf32>
    %371 = vector.extract_strided_slice %367 {offsets = [0, 96], sizes = [1, 32], strides = [1, 1]} : vector<1x128xf32> to vector<1x32xf32>
    %372 = arith.mulf %369, %348 : vector<1x32xf32>
    %373 = arith.mulf %368, %371 : vector<1x32xf32>
    %374 = arith.addf %372, %373 : vector<1x32xf32>
    %375 = math.tanh %374 : vector<1x32xf32>
    %376 = arith.mulf %370, %375 : vector<1x32xf32>
    %377 = arith.index_cast %c12_i32 : i32 to index
    %c0_111 = arith.constant 0 : index
    %378 = vector.load %arg5[%377, %c0_111] : memref<16x32xf32, #tpu.memory_space<vmem>>, vector<1x32xf32>
    tpu.vector_store %arg5[%377, %c0_111], %376 masked %21 {strides = array<i32>} : memref<16x32xf32, #tpu.memory_space<vmem>>, vector<1x32xf32>, vector<1x32xi1>
    %c15_i32_112 = arith.constant 15 : i32
    %379 = arith.subi %c15_i32_112, %c12_i32 : i32
    %380 = arith.index_cast %379 : i32 to index
    %c0_113 = arith.constant 0 : index
    %381 = vector.load %arg5[%380, %c0_113] : memref<16x32xf32, #tpu.memory_space<vmem>>, vector<1x32xf32>
    tpu.vector_store %arg5[%380, %c0_113], %376 masked %23 {strides = array<i32>} : memref<16x32xf32, #tpu.memory_space<vmem>>, vector<1x32xf32>, vector<1x32xi1>
    %c13_i32 = arith.constant 13 : i32
    %382 = arith.index_cast %c13_i32 : i32 to index
    %c0_114 = arith.constant 0 : index
    %383 = vector.load %arg6[%382, %c0_114] : memref<16x128xf32, #tpu.memory_space<vmem>>, vector<1x128xf32>
    %c15_i32_115 = arith.constant 15 : i32
    %384 = arith.subi %c15_i32_115, %c13_i32 : i32
    %385 = arith.index_cast %384 : i32 to index
    %c0_116 = arith.constant 0 : index
    %386 = vector.load %arg6[%385, %c0_116] : memref<16x128xf32, #tpu.memory_space<vmem>>, vector<1x128xf32>
    %387 = arith.select %19, %383, %386 : vector<1x128xi1>, vector<1x128xf32>
    %cst_117 = arith.constant dense<0.000000e+00> : vector<1x128xf32>
    %388 = tpu.matmul %376, %42, %cst_117 {dimension_numbers = #tpu.dot_dimension_numbers<[1], [0], [0], [1], [0, 0, 1, 1], [], []>} : vector<1x32xf32>, vector<32x128xf32>, vector<1x128xf32> -> vector<1x128xf32>
    %389 = arith.addf %387, %388 : vector<1x128xf32>
    %390 = arith.mulf %389, %28 : vector<1x128xf32>
    %391 = math.tanh %390 : vector<1x128xf32>
    %392 = arith.mulf %391, %28 : vector<1x128xf32>
    %393 = arith.addf %392, %31 : vector<1x128xf32>
    %394 = vector.extract_strided_slice %393 {offsets = [0, 0], sizes = [1, 32], strides = [1, 1]} : vector<1x128xf32> to vector<1x32xf32>
    %395 = vector.extract_strided_slice %393 {offsets = [0, 32], sizes = [1, 32], strides = [1, 1]} : vector<1x128xf32> to vector<1x32xf32>
    %396 = vector.extract_strided_slice %393 {offsets = [0, 64], sizes = [1, 32], strides = [1, 1]} : vector<1x128xf32> to vector<1x32xf32>
    %397 = vector.extract_strided_slice %393 {offsets = [0, 96], sizes = [1, 32], strides = [1, 1]} : vector<1x128xf32> to vector<1x32xf32>
    %398 = arith.mulf %395, %374 : vector<1x32xf32>
    %399 = arith.mulf %394, %397 : vector<1x32xf32>
    %400 = arith.addf %398, %399 : vector<1x32xf32>
    %401 = math.tanh %400 : vector<1x32xf32>
    %402 = arith.mulf %396, %401 : vector<1x32xf32>
    %403 = arith.index_cast %c13_i32 : i32 to index
    %c0_118 = arith.constant 0 : index
    %404 = vector.load %arg5[%403, %c0_118] : memref<16x32xf32, #tpu.memory_space<vmem>>, vector<1x32xf32>
    tpu.vector_store %arg5[%403, %c0_118], %402 masked %21 {strides = array<i32>} : memref<16x32xf32, #tpu.memory_space<vmem>>, vector<1x32xf32>, vector<1x32xi1>
    %c15_i32_119 = arith.constant 15 : i32
    %405 = arith.subi %c15_i32_119, %c13_i32 : i32
    %406 = arith.index_cast %405 : i32 to index
    %c0_120 = arith.constant 0 : index
    %407 = vector.load %arg5[%406, %c0_120] : memref<16x32xf32, #tpu.memory_space<vmem>>, vector<1x32xf32>
    tpu.vector_store %arg5[%406, %c0_120], %402 masked %23 {strides = array<i32>} : memref<16x32xf32, #tpu.memory_space<vmem>>, vector<1x32xf32>, vector<1x32xi1>
    %c14_i32 = arith.constant 14 : i32
    %408 = arith.index_cast %c14_i32 : i32 to index
    %c0_121 = arith.constant 0 : index
    %409 = vector.load %arg6[%408, %c0_121] : memref<16x128xf32, #tpu.memory_space<vmem>>, vector<1x128xf32>
    %c15_i32_122 = arith.constant 15 : i32
    %410 = arith.subi %c15_i32_122, %c14_i32 : i32
    %411 = arith.index_cast %410 : i32 to index
    %c0_123 = arith.constant 0 : index
    %412 = vector.load %arg6[%411, %c0_123] : memref<16x128xf32, #tpu.memory_space<vmem>>, vector<1x128xf32>
    %413 = arith.select %19, %409, %412 : vector<1x128xi1>, vector<1x128xf32>
    %cst_124 = arith.constant dense<0.000000e+00> : vector<1x128xf32>
    %414 = tpu.matmul %402, %42, %cst_124 {dimension_numbers = #tpu.dot_dimension_numbers<[1], [0], [0], [1], [0, 0, 1, 1], [], []>} : vector<1x32xf32>, vector<32x128xf32>, vector<1x128xf32> -> vector<1x128xf32>
    %415 = arith.addf %413, %414 : vector<1x128xf32>
    %416 = arith.mulf %415, %28 : vector<1x128xf32>
    %417 = math.tanh %416 : vector<1x128xf32>
    %418 = arith.mulf %417, %28 : vector<1x128xf32>
    %419 = arith.addf %418, %31 : vector<1x128xf32>
    %420 = vector.extract_strided_slice %419 {offsets = [0, 0], sizes = [1, 32], strides = [1, 1]} : vector<1x128xf32> to vector<1x32xf32>
    %421 = vector.extract_strided_slice %419 {offsets = [0, 32], sizes = [1, 32], strides = [1, 1]} : vector<1x128xf32> to vector<1x32xf32>
    %422 = vector.extract_strided_slice %419 {offsets = [0, 64], sizes = [1, 32], strides = [1, 1]} : vector<1x128xf32> to vector<1x32xf32>
    %423 = vector.extract_strided_slice %419 {offsets = [0, 96], sizes = [1, 32], strides = [1, 1]} : vector<1x128xf32> to vector<1x32xf32>
    %424 = arith.mulf %421, %400 : vector<1x32xf32>
    %425 = arith.mulf %420, %423 : vector<1x32xf32>
    %426 = arith.addf %424, %425 : vector<1x32xf32>
    %427 = math.tanh %426 : vector<1x32xf32>
    %428 = arith.mulf %422, %427 : vector<1x32xf32>
    %429 = arith.index_cast %c14_i32 : i32 to index
    %c0_125 = arith.constant 0 : index
    %430 = vector.load %arg5[%429, %c0_125] : memref<16x32xf32, #tpu.memory_space<vmem>>, vector<1x32xf32>
    tpu.vector_store %arg5[%429, %c0_125], %428 masked %21 {strides = array<i32>} : memref<16x32xf32, #tpu.memory_space<vmem>>, vector<1x32xf32>, vector<1x32xi1>
    %c15_i32_126 = arith.constant 15 : i32
    %431 = arith.subi %c15_i32_126, %c14_i32 : i32
    %432 = arith.index_cast %431 : i32 to index
    %c0_127 = arith.constant 0 : index
    %433 = vector.load %arg5[%432, %c0_127] : memref<16x32xf32, #tpu.memory_space<vmem>>, vector<1x32xf32>
    tpu.vector_store %arg5[%432, %c0_127], %428 masked %23 {strides = array<i32>} : memref<16x32xf32, #tpu.memory_space<vmem>>, vector<1x32xf32>, vector<1x32xi1>
    %c15_i32_128 = arith.constant 15 : i32
    %434 = arith.index_cast %c15_i32_128 : i32 to index
    %c0_129 = arith.constant 0 : index
    %435 = vector.load %arg6[%434, %c0_129] : memref<16x128xf32, #tpu.memory_space<vmem>>, vector<1x128xf32>
    %c15_i32_130 = arith.constant 15 : i32
    %436 = arith.subi %c15_i32_130, %c15_i32_128 : i32
    %437 = arith.index_cast %436 : i32 to index
    %c0_131 = arith.constant 0 : index
    %438 = vector.load %arg6[%437, %c0_131] : memref<16x128xf32, #tpu.memory_space<vmem>>, vector<1x128xf32>
    %439 = arith.select %19, %435, %438 : vector<1x128xi1>, vector<1x128xf32>
    %cst_132 = arith.constant dense<0.000000e+00> : vector<1x128xf32>
    %440 = tpu.matmul %428, %42, %cst_132 {dimension_numbers = #tpu.dot_dimension_numbers<[1], [0], [0], [1], [0, 0, 1, 1], [], []>} : vector<1x32xf32>, vector<32x128xf32>, vector<1x128xf32> -> vector<1x128xf32>
    %441 = arith.addf %439, %440 : vector<1x128xf32>
    %442 = arith.mulf %441, %28 : vector<1x128xf32>
    %443 = math.tanh %442 : vector<1x128xf32>
    %444 = arith.mulf %443, %28 : vector<1x128xf32>
    %445 = arith.addf %444, %31 : vector<1x128xf32>
    %446 = vector.extract_strided_slice %445 {offsets = [0, 0], sizes = [1, 32], strides = [1, 1]} : vector<1x128xf32> to vector<1x32xf32>
    %447 = vector.extract_strided_slice %445 {offsets = [0, 32], sizes = [1, 32], strides = [1, 1]} : vector<1x128xf32> to vector<1x32xf32>
    %448 = vector.extract_strided_slice %445 {offsets = [0, 64], sizes = [1, 32], strides = [1, 1]} : vector<1x128xf32> to vector<1x32xf32>
    %449 = vector.extract_strided_slice %445 {offsets = [0, 96], sizes = [1, 32], strides = [1, 1]} : vector<1x128xf32> to vector<1x32xf32>
    %450 = arith.mulf %447, %426 : vector<1x32xf32>
    %451 = arith.mulf %446, %449 : vector<1x32xf32>
    %452 = arith.addf %450, %451 : vector<1x32xf32>
    %453 = math.tanh %452 : vector<1x32xf32>
    %454 = arith.mulf %448, %453 : vector<1x32xf32>
    %455 = arith.index_cast %c15_i32_128 : i32 to index
    %c0_133 = arith.constant 0 : index
    %456 = vector.load %arg5[%455, %c0_133] : memref<16x32xf32, #tpu.memory_space<vmem>>, vector<1x32xf32>
    tpu.vector_store %arg5[%455, %c0_133], %454 masked %21 {strides = array<i32>} : memref<16x32xf32, #tpu.memory_space<vmem>>, vector<1x32xf32>, vector<1x32xi1>
    %c15_i32_134 = arith.constant 15 : i32
    %457 = arith.subi %c15_i32_134, %c15_i32_128 : i32
    %458 = arith.index_cast %457 : i32 to index
    %c0_135 = arith.constant 0 : index
    %459 = vector.load %arg5[%458, %c0_135] : memref<16x32xf32, #tpu.memory_space<vmem>>, vector<1x32xf32>
    tpu.vector_store %arg5[%458, %c0_135], %454 masked %23 {strides = array<i32>} : memref<16x32xf32, #tpu.memory_space<vmem>>, vector<1x32xf32>, vector<1x32xi1>
    %c16_i32_136 = arith.constant 16 : i32
    return
  }
  func.func @transform_0(%arg0: i32) -> (i32, i32) {
    %c0_i32 = arith.constant 0 : i32
    %c0_i32_0 = arith.constant 0 : i32
    %c0_i32_1 = arith.constant 0 : i32
    return %c0_i32, %c0_i32_0 : i32, i32
  }
  func.func @transform_1(%arg0: i32) -> (i32, i32, i32) {
    %c0_i32 = arith.constant 0 : i32
    %c0_i32_0 = arith.constant 0 : i32
    %c0_i32_1 = arith.constant 0 : i32
    %c0_i32_2 = arith.constant 0 : i32
    return %c0_i32, %c0_i32_0, %c0_i32_1 : i32, i32, i32
  }
  func.func @transform_2(%arg0: i32) -> (i32, i32, i32) {
    %c0_i32 = arith.constant 0 : i32
    %c0_i32_0 = arith.constant 0 : i32
    %c0_i32_1 = arith.constant 0 : i32
    %c0_i32_2 = arith.constant 0 : i32
    return %c0_i32, %c0_i32_0, %c0_i32_1 : i32, i32, i32
  }
  func.func @transform_3(%arg0: i32) -> (i32, i32, i32) {
    %c0_i32 = arith.constant 0 : i32
    %c0_i32_0 = arith.constant 0 : i32
    %c0_i32_1 = arith.constant 0 : i32
    %c0_i32_2 = arith.constant 0 : i32
    return %c0_i32, %c0_i32_0, %c0_i32_1 : i32, i32, i32
  }
  func.func @transform_4(%arg0: i32) -> (i32, i32) {
    %c0_i32 = arith.constant 0 : i32
    %c0_i32_0 = arith.constant 0 : i32
    %c0_i32_1 = arith.constant 0 : i32
    return %c0_i32, %c0_i32_0 : i32, i32
  }
}

</mosaic_0001>

<llo_original>
// kernel: brnns_char_forward.1
$region0: #{brnns_char_forward.1}
  #allocation0 [shape = 'u32[]', space=smem, size = 0x4, offset = 0x4, fixed_abs, tag = 'smem constant byte address 0x4 - core index']
  #allocation1 [shape = 'u32[72,128]{1,0:T(1,128)}', space=vmem, size = 0x9000, scoped, tag = 'internal scratch']
  #allocation2 [shape = 'f32[16,128]{1,0:T(8,128)}', space=vmem, size = 0x2000, scoped, tag = 'scratch operand']
  #allocation3 [shape = 'f32[16,32]{1,0:T(8,128)}', space=vmem, size = 0x2000, scoped, tag = 'scratch operand']
  %s0 = inlined_call_operand.vmem [shape: f32[16,8], index: 0, kind: input, shape index: {}]
  %s1 = inlined_call_operand.vmem [shape: f32[1,32,128], index: 1, kind: input, shape index: {}]
  %s2 = inlined_call_operand.hbm [shape: f32[1,32,128], index: 2, kind: input, shape index: {}]
  %s3 = inlined_call_operand.vmem [shape: f32[1,1,128], index: 3, kind: input, shape index: {}]
  %s4 = inlined_call_operand.hbm [shape: f32[16,32], index: 4, kind: output, shape index: {}]
  %s5 = sld [smem:[#allocation0]]
  $region30: #{brnns_char_forward.1} parent=0
    _
  %s7 = ssub.s32 1, %s5
  %s8 = scalar_select 0, %s7, %s5
  $region1: #{brnns_char_forward.1} parent=0
    #allocation4 [shape = 'u8[16384]{0}', space=vmem, size = 0x4000, scoped, tag = 'input window, operand 2, single buffered']
    #allocation5 [shape = 's32[1]{0}', space=sflag, size = 0x4, scoped, tag = 'scoped memory for brnns_char_forward.1']
    #allocation6 [shape = 's32[1]{0}', space=sflag, size = 0x4, scoped, tag = 'scoped memory for brnns_char_forward.1']
    #allocation7 [shape = 'u8[8192]{0}', space=vmem, size = 0x2000, scoped, tag = 'output window, operand 0, single buffered']
    %9 = vsyncpa [#allocation5], 0
    %10 = vsyncpa [#allocation6], 0
    // Predicated region
    $region2: #{brnns_char_forward.1} parent=1 // pred_check
      _
    $region3: #{brnns_char_forward.1} parent=1 // pred_check_branch
      %12 = sbr.rel (0) target = $region5
    $region4: #{brnns_char_forward.1} parent=1 // pred_region
      _
    $region5: #{brnns_char_forward.1} parent=1 // pred_fallthru
      _
    // Predicated region
    $region6: #{brnns_char_forward.1} parent=1 // pred_check
      _
    $region7: #{brnns_char_forward.1} parent=1 // pred_check_branch
      %14 = sbr.rel (0) target = $region9
    $region8: #{brnns_char_forward.1} parent=1 // pred_region
      _
    $region9: #{brnns_char_forward.1} parent=1 // pred_fallthru
      _
    // Predicated region
    $region10: #{brnns_char_forward.1} parent=1 // pred_check
      _
    $region11: #{brnns_char_forward.1} parent=1 // pred_check_branch
      %16 = sbr.rel (0) target = $region13
    $region12: #{brnns_char_forward.1} parent=1 // pred_region
      %18 = vsyncadd [#allocation5], 0
      %s19 = sshll.u32 %s2, 4
      %s20 = int_to_ptr.hbm [resolvable:$true] %s19
      %s21 = sshll.u32 [#allocation4], 4
      %s22 = int_to_ptr.vmem [resolvable:$true] %s21
      %27 = dma.hbm_to_vmem [thread:$0]  %s20, 512, %s22, [#allocation5], 128, 128, 8
    $region13: #{brnns_char_forward.1} parent=1 // pred_fallthru
      _
    // Predicated region
    $region14: #{brnns_char_forward.1} parent=1 // pred_check
      _
    $region15: #{brnns_char_forward.1} parent=1 // pred_check_branch
      %29 = sbr.rel (0) target = $region17
    $region16: #{brnns_char_forward.1} parent=1 // pred_region
      _
    $region17: #{brnns_char_forward.1} parent=1 // pred_fallthru
      _
    // Predicated region
    $region18: #{brnns_char_forward.1} parent=1 // pred_check
      _
    $region19: #{brnns_char_forward.1} parent=1 // pred_check_branch
      %31 = sbr.rel (0) target = $region21
    $region20: #{brnns_char_forward.1} parent=1 // pred_region
      %33 = dma.done [#allocation5], 512
    $region21: #{brnns_char_forward.1} parent=1 // pred_fallthru
      _
    %v34 = vlaneseq
    %v35 = vand.u32 %v34, 127
    %vm36 = vcmp.lt.s32.totalorder %v35, 0
    %v37 = vsub.s32 0, %v35
    %v38 = vsel %vm36, %v37, %v35
    %v39 = vshrl.u32 %v38, 5
    %v40 = vand.u32 %v38, 31
    %v41 = vsub.s32 0, %v40
    %v42 = vsel %vm36, %v41, %v40
    %vm43 = vcmp.ne.s32.totalorder %v42, 0
    %vm44 = vcmp.lt.s32.totalorder %v42, 0
    %vm45 = vmand %vm44, %vm43
    %v46 = vadd.s32 %v42, 32
    %v47 = vsel %vm45, %v46, %v42
    %vm48 = vcmp.lt.s32.totalorder %v47, 16
    %vm49 = vcmp.lt.s32.totalorder %v35, 16
    %vm50 = vcmp.ge.s32.totalorder %v35, 16
    %vm51 = vcmp.lt.s32.totalorder %v35, 96
    %v52 = vsel %vm51, 0.5, 1.0
    %v53 = vsel %vm51, 0.5, 0.0
    %v54 = vld [vmem:[%s0] sm:$0xff]
    %v55 = vld [vmem:[%s0 + $0x8] sm:$0xff]
    %v56 = vld [vmem:[%s1] sm:$0xff]
    %v57 = vld [vmem:[%s3] sm:$0x1]
    %v59 = vperm.slane %v57, 0
    %vm61 = vcmask 64512
    %v63 = vsel %vm61, %v54, 0
    %v66 = vsel %vm61, %v55, 0
    %68 = vmatpush.msra.mxu0 0.0
    %69 = vmatpush.msra.mxu0 0.0
    %70 = vmatpush.msra.mxu0 0.0
    %71 = vmatpush.msra.mxu0 0.0
    %72 = vmatpush.msra.mxu0 0.0
    %73 = vmatpush.msra.mxu0 0.0
    %74 = vmatpush.msra.mxu0 0.0
    %75 = vmatpush.msra.mxu0 0.0
    %76 = vmatpush.msra.mxu0 0.0
    %77 = vmatpush.msra.mxu0 0.0
    %78 = vmatpush.msra.mxu0 0.0
    %79 = vmatpush.msra.mxu0 0.0
    %80 = vmatpush.msra.mxu0 0.0
    %81 = vmatpush.msra.mxu0 0.0
    %82 = vmatpush.msra.mxu0 0.0
    %v83 = vand.u32 %v56, 4294901760
    %84 = vmatpush.msra.mxu0 %v83
    %v85 = vand.u32 %v63, 4294901760
    %v86 = vsub.f32 %v63, %v85
    %v87 = vand.u32 %v86, 4294901760
    %v88 = vsub.f32 %v86, %v87
    %v89 = vand.u32 %v88, 4294901760
    %90 = vmatmul.f32.gmra.mxu0 %v89
    %v91 = vpop.f32.mrf.mxu0
    %v92 = vadd.f32 %v59, %v91
    %v93 = vand.u32 %v66, 4294901760
    %v94 = vsub.f32 %v66, %v93
    %v95 = vand.u32 %v94, 4294901760
    %v96 = vsub.f32 %v94, %v95
    %v97 = vand.u32 %v96, 4294901760
    %98 = vmatmul.f32.gmra.mxu0 %v97
    %v99 = vpop.f32.mrf.mxu0
    %v100 = vadd.f32 %v59, %v99
    %101 = vdwg.mxu0
    %102 = vmatpush.msra.mxu0 0.0
    %103 = vmatpush.msra.mxu0 0.0
    %104 = vmatpush.msra.mxu0 0.0
    %105 = vmatpush.msra.mxu0 0.0
    %106 = vmatpush.msra.mxu0 0.0
    %107 = vmatpush.msra.mxu0 0.0
    %108 = vmatpush.msra.mxu0 0.0
    %109 = vmatpush.msra.mxu0 0.0
    %110 = vmatpush.msra.mxu0 0.0
    %111 = vmatpush.msra.mxu0 0.0
    %112 = vmatpush.msra.mxu0 0.0
    %113 = vmatpush.msra.mxu0 0.0
    %114 = vmatpush.msra.mxu0 0.0
    %115 = vmatpush.msra.mxu0 0.0
    %116 = vmatpush.msra.mxu0 0.0
    %v117 = vand.u32 %v56, 4294901760
    %v118 = vsub.f32 %v56, %v117
    %v119 = vand.u32 %v118, 4294901760
    %v120 = vsub.f32 %v118, %v119
    %v121 = vand.u32 %v120, 4294901760
    %122 = vmatpush.msra.mxu0 %v121
    %v123 = vand.u32 %v63, 4294901760
    %124 = vmatmul.f32.gmra.mxu0 %v123
    %v125 = vpop.f32.mrf.mxu0
    %v126 = vadd.f32 %v92, %v125
    %v127 = vand.u32 %v66, 4294901760
    %128 = vmatmul.f32.gmra.mxu0 %v127
    %v129 = vpop.f32.mrf.mxu0
    %v130 = vadd.f32 %v100, %v129
    %131 = vdwg.mxu0
    %132 = vmatpush.msra.mxu0 0.0
    %133 = vmatpush.msra.mxu0 0.0
    %134 = vmatpush.msra.mxu0 0.0
    %135 = vmatpush.msra.mxu0 0.0
    %136 = vmatpush.msra.mxu0 0.0
    %137 = vmatpush.msra.mxu0 0.0
    %138 = vmatpush.msra.mxu0 0.0
    %139 = vmatpush.msra.mxu0 0.0
    %140 = vmatpush.msra.mxu0 0.0
    %141 = vmatpush.msra.mxu0 0.0
    %142 = vmatpush.msra.mxu0 0.0
    %143 = vmatpush.msra.mxu0 0.0
    %144 = vmatpush.msra.mxu0 0.0
    %145 = vmatpush.msra.mxu0 0.0
    %146 = vmatpush.msra.mxu0 0.0
    %v147 = vand.u32 %v56, 4294901760
    %v148 = vsub.f32 %v56, %v147
    %149 = vmatpush.msra.mxu0 %v148
    %v150 = vand.u32 %v63, 4294901760
    %v151 = vsub.f32 %v63, %v150
    %152 = vmatmul.f32.gmra.mxu0 %v151
    %v153 = vpop.f32.mrf.mxu0
    %v154 = vadd.f32 %v126, %v153
    %v155 = vand.u32 %v66, 4294901760
    %v156 = vsub.f32 %v66, %v155
    %157 = vmatmul.f32.gmra.mxu0 %v156
    %v158 = vpop.f32.mrf.mxu0
    %v159 = vadd.f32 %v130, %v158
    %160 = vdwg.mxu0
    %161 = vmatpush.msra.mxu0 0.0
    %162 = vmatpush.msra.mxu0 0.0
    %163 = vmatpush.msra.mxu0 0.0
    %164 = vmatpush.msra.mxu0 0.0
    %165 = vmatpush.msra.mxu0 0.0
    %166 = vmatpush.msra.mxu0 0.0
    %167 = vmatpush.msra.mxu0 0.0
    %168 = vmatpush.msra.mxu0 0.0
    %169 = vmatpush.msra.mxu0 0.0
    %170 = vmatpush.msra.mxu0 0.0
    %171 = vmatpush.msra.mxu0 0.0
    %172 = vmatpush.msra.mxu0 0.0
    %173 = vmatpush.msra.mxu0 0.0
    %174 = vmatpush.msra.mxu0 0.0
    %175 = vmatpush.msra.mxu0 0.0
    %v176 = vand.u32 %v56, 4294901760
    %177 = vmatpush.msra.mxu0 %v176
    %v178 = vand.u32 %v63, 4294901760
    %v179 = vsub.f32 %v63, %v178
    %v180 = vand.u32 %v179, 4294901760
    %181 = vmatmul.f32.gmra.mxu0 %v180
    %v182 = vpop.f32.mrf.mxu0
    %v183 = vadd.f32 %v154, %v182
    %v184 = vand.u32 %v66, 4294901760
    %v185 = vsub.f32 %v66, %v184
    %v186 = vand.u32 %v185, 4294901760
    %187 = vmatmul.f32.gmra.mxu0 %v186
    %v188 = vpop.f32.mrf.mxu0
    %v189 = vadd.f32 %v159, %v188
    %190 = vdwg.mxu0
    %191 = vmatpush.msra.mxu0 0.0
    %192 = vmatpush.msra.mxu0 0.0
    %193 = vmatpush.msra.mxu0 0.0
    %194 = vmatpush.msra.mxu0 0.0
    %195 = vmatpush.msra.mxu0 0.0
    %196 = vmatpush.msra.mxu0 0.0
    %197 = vmatpush.msra.mxu0 0.0
    %198 = vmatpush.msra.mxu0 0.0
    %199 = vmatpush.msra.mxu0 0.0
    %200 = vmatpush.msra.mxu0 0.0
    %201 = vmatpush.msra.mxu0 0.0
    %202 = vmatpush.msra.mxu0 0.0
    %203 = vmatpush.msra.mxu0 0.0
    %204 = vmatpush.msra.mxu0 0.0
    %205 = vmatpush.msra.mxu0 0.0
    %v206 = vand.u32 %v56, 4294901760
    %v207 = vsub.f32 %v56, %v206
    %v208 = vand.u32 %v207, 4294901760
    %209 = vmatpush.msra.mxu0 %v208
    %v210 = vand.u32 %v63, 4294901760
    %211 = vmatmul.f32.gmra.mxu0 %v210
    %v212 = vpop.f32.mrf.mxu0
    %v213 = vadd.f32 %v183, %v212
    %v214 = vand.u32 %v66, 4294901760
    %215 = vmatmul.f32.gmra.mxu0 %v214
    %v216 = vpop.f32.mrf.mxu0
    %v217 = vadd.f32 %v189, %v216
    %218 = vdwg.mxu0
    %219 = vmatpush.msra.mxu0 0.0
    %220 = vmatpush.msra.mxu0 0.0
    %221 = vmatpush.msra.mxu0 0.0
    %222 = vmatpush.msra.mxu0 0.0
    %223 = vmatpush.msra.mxu0 0.0
    %224 = vmatpush.msra.mxu0 0.0
    %225 = vmatpush.msra.mxu0 0.0
    %226 = vmatpush.msra.mxu0 0.0
    %227 = vmatpush.msra.mxu0 0.0
    %228 = vmatpush.msra.mxu0 0.0
    %229 = vmatpush.msra.mxu0 0.0
    %230 = vmatpush.msra.mxu0 0.0
    %231 = vmatpush.msra.mxu0 0.0
    %232 = vmatpush.msra.mxu0 0.0
    %233 = vmatpush.msra.mxu0 0.0
    %v234 = vand.u32 %v56, 4294901760
    %235 = vmatpush.msra.mxu0 %v234
    %v236 = vand.u32 %v63, 4294901760
    %237 = vmatmul.f32.gmra.mxu0 %v236
    %v238 = vpop.f32.mrf.mxu0
    %v239 = vadd.f32 %v213, %v238
    %v240 = vand.u32 %v66, 4294901760
    %241 = vmatmul.f32.gmra.mxu0 %v240
    %v242 = vpop.f32.mrf.mxu0
    %v243 = vadd.f32 %v217, %v242
    %244 = vdwg.mxu0
    %245 = vst [vmem:[#allocation2] sm:$0xff] %v239
    %246 = vst [vmem:[#allocation2 + $0x8] sm:$0xff] %v243
    %v247 = vld [vmem:[#allocation4] sm:$0xff]
    %v248 = vld [vmem:[#allocation4 + $0x8] sm:$0xff]
    %v249 = vld [vmem:[#allocation4 + $0x10] sm:$0xff]
    %v250 = vld [vmem:[#allocation4 + $0x18] sm:$0xff]
    %v251 = vld [vmem:[#allocation2] sm:$0x1]
    %v252 = vld [vmem:[#allocation2 + $0xf] sm:$0x1]
    %v253 = vsel %vm48, %v251, %v252
    %vm254 = vcmask 261120
    %v256 = vsel %vm254, 0.0, 0
    %258 = vmatpush.msra.mxu0 0.0
    %259 = vmatpush.msra.mxu0 0.0
    %260 = vmatpush.msra.mxu0 0.0
    %261 = vmatpush.msra.mxu0 0.0
    %262 = vmatpush.msra.mxu0 0.0
    %263 = vmatpush.msra.mxu0 0.0
    %264 = vmatpush.msra.mxu0 0.0
    %265 = vmatpush.msra.mxu0 0.0
    %266 = vmatpush.msra.mxu0 0.0
    %267 = vmatpush.msra.mxu0 0.0
    %268 = vmatpush.msra.mxu0 0.0
    %269 = vmatpush.msra.mxu0 0.0
    %270 = vmatpush.msra.mxu0 %v250
    %271 = vmatpush.msra.mxu0 %v249
    %272 = vmatpush.msra.mxu0 %v248
    %273 = vmatpush.msra.mxu0 %v247
    %274 = vmatmul.f32.gmra.mxu0 %v256
    %v275 = vpop.f32.mrf.mxu0
    %v276 = vadd.f32 0.0, %v275
    %277 = vdwg.mxu0
    %v278 = vadd.f32 %v253, %v276
    %v279 = vmul.f32 %v278, %v52
    %v280 = vtanh.pop %v279
    %v281 = vmul.f32 %v280, %v52
    %v282 = vadd.f32 %v281, %v53
    %v283 = vmul.f32 %v282, 0.0
    %285 = vrot.lane.b32.xlu0 %v282, 32
    %v286 = vpop.permute.xlu0 %285
    %v288 = vmul.f32 %v282, %v286
    %290 = vrot.lane.b32.xlu0 %v288, 32
    %v291 = vpop.permute.xlu0 %290
    %v293 = vadd.f32 %v283, %v291
    %v294 = vtanh.pop %v293
    %296 = vrot.lane.b32.xlu0 %v294, 32
    %v297 = vpop.permute.xlu0 %296
    %v299 = vmul.f32 %v282, %v297
    %301 = vrot.lane.b32.xlu0 %v299, 64
    %v302 = vpop.permute.xlu0 %301
    %vm304 = vcmask 253952
    %vm305 = vmand %vm304, %vm49
    %306 = vst.msk [vmem:[#allocation7] sm:$0x1] %vm305, %v302
    %vm307 = vmand %vm304, %vm50
    %308 = vst.msk [vmem:[#allocation7 + $0xf] sm:$0x1] %vm307, %v302
    %v309 = vld [vmem:[#allocation2 + $0x1] sm:$0x1]
    %v310 = vld [vmem:[#allocation2 + $0xe] sm:$0x1]
    %v311 = vsel %vm48, %v309, %v310
    %v312 = vsel %vm254, %v302, 0
    %314 = vmatpush.msra.mxu0 0.0
    %315 = vmatpush.msra.mxu0 0.0
    %316 = vmatpush.msra.mxu0 0.0
    %317 = vmatpush.msra.mxu0 0.0
    %318 = vmatpush.msra.mxu0 0.0
    %319 = vmatpush.msra.mxu0 0.0
    %320 = vmatpush.msra.mxu0 0.0
    %321 = vmatpush.msra.mxu0 0.0
    %322 = vmatpush.msra.mxu0 0.0
    %323 = vmatpush.msra.mxu0 0.0
    %324 = vmatpush.msra.mxu0 0.0
    %325 = vmatpush.msra.mxu0 0.0
    %326 = vmatpush.msra.mxu0 %v250
    %327 = vmatpush.msra.mxu0 %v249
    %328 = vmatpush.msra.mxu0 %v248
    %329 = vmatpush.msra.mxu0 %v247
    %330 = vmatmul.f32.gmra.mxu0 %v312
    %v331 = vpop.f32.mrf.mxu0
    %v332 = vadd.f32 0.0, %v331
    %333 = vdwg.mxu0
    %v334 = vadd.f32 %v311, %v332
    %v335 = vmul.f32 %v334, %v52
    %v336 = vtanh.pop %v335
    %v337 = vmul.f32 %v336, %v52
    %v338 = vadd.f32 %v337, %v53
    %v339 = vmul.f32 %v338, %v293
    %341 = vrot.lane.b32.xlu0 %v338, 32
    %v342 = vpop.permute.xlu0 %341
    %v344 = vmul.f32 %v338, %v342
    %346 = vrot.lane.b32.xlu0 %v344, 32
    %v347 = vpop.permute.xlu0 %346
    %v349 = vadd.f32 %v339, %v347
    %v350 = vtanh.pop %v349
    %352 = vrot.lane.b32.xlu0 %v350, 32
    %v353 = vpop.permute.xlu0 %352
    %v355 = vmul.f32 %v338, %v353
    %357 = vrot.lane.b32.xlu0 %v355, 64
    %v358 = vpop.permute.xlu0 %357
    %360 = vst.msk [vmem:[#allocation7 + $0x1] sm:$0x1] %vm305, %v358
    %361 = vst.msk [vmem:[#allocation7 + $0xe] sm:$0x1] %vm307, %v358
    %v362 = vld [vmem:[#allocation2 + $0x2] sm:$0x1]
    %v363 = vld [vmem:[#allocation2 + $0xd] sm:$0x1]
    %v364 = vsel %vm48, %v362, %v363
    %v365 = vsel %vm254, %v358, 0
    %367 = vmatpush.msra.mxu0 0.0
    %368 = vmatpush.msra.mxu0 0.0
    %369 = vmatpush.msra.mxu0 0.0
    %370 = vmatpush.msra.mxu0 0.0
    %371 = vmatpush.msra.mxu0 0.0
    %372 = vmatpush.msra.mxu0 0.0
    %373 = vmatpush.msra.mxu0 0.0
    %374 = vmatpush.msra.mxu0 0.0
    %375 = vmatpush.msra.mxu0 0.0
    %376 = vmatpush.msra.mxu0 0.0
    %377 = vmatpush.msra.mxu0 0.0
    %378 = vmatpush.msra.mxu0 0.0
    %379 = vmatpush.msra.mxu0 %v250
    %380 = vmatpush.msra.mxu0 %v249
    %381 = vmatpush.msra.mxu0 %v248
    %382 = vmatpush.msra.mxu0 %v247
    %383 = vmatmul.f32.gmra.mxu0 %v365
    %v384 = vpop.f32.mrf.mxu0
    %v385 = vadd.f32 0.0, %v384
    %386 = vdwg.mxu0
    %v387 = vadd.f32 %v364, %v385
    %v388 = vmul.f32 %v387, %v52
    %v389 = vtanh.pop %v388
    %v390 = vmul.f32 %v389, %v52
    %v391 = vadd.f32 %v390, %v53
    %v392 = vmul.f32 %v391, %v349
    %394 = vrot.lane.b32.xlu0 %v391, 32
    %v395 = vpop.permute.xlu0 %394
    %v397 = vmul.f32 %v391, %v395
    %399 = vrot.lane.b32.xlu0 %v397, 32
    %v400 = vpop.permute.xlu0 %399
    %v402 = vadd.f32 %v392, %v400
    %v403 = vtanh.pop %v402
    %405 = vrot.lane.b32.xlu0 %v403, 32
    %v406 = vpop.permute.xlu0 %405
    %v408 = vmul.f32 %v391, %v406
    %410 = vrot.lane.b32.xlu0 %v408, 64
    %v411 = vpop.permute.xlu0 %410
    %413 = vst.msk [vmem:[#allocation7 + $0x2] sm:$0x1] %vm305, %v411
    %414 = vst.msk [vmem:[#allocation7 + $0xd] sm:$0x1] %vm307, %v411
    %v415 = vld [vmem:[#allocation2 + $0x3] sm:$0x1]
    %v416 = vld [vmem:[#allocation2 + $0xc] sm:$0x1]
    %v417 = vsel %vm48, %v415, %v416
    %v418 = vsel %vm254, %v411, 0
    %420 = vmatpush.msra.mxu0 0.0
    %421 = vmatpush.msra.mxu0 0.0
    %422 = vmatpush.msra.mxu0 0.0
    %423 = vmatpush.msra.mxu0 0.0
    %424 = vmatpush.msra.mxu0 0.0
    %425 = vmatpush.msra.mxu0 0.0
    %426 = vmatpush.msra.mxu0 0.0
    %427 = vmatpush.msra.mxu0 0.0
    %428 = vmatpush.msra.mxu0 0.0
    %429 = vmatpush.msra.mxu0 0.0
    %430 = vmatpush.msra.mxu0 0.0
    %431 = vmatpush.msra.mxu0 0.0
    %432 = vmatpush.msra.mxu0 %v250
    %433 = vmatpush.msra.mxu0 %v249
    %434 = vmatpush.msra.mxu0 %v248
    %435 = vmatpush.msra.mxu0 %v247
    %436 = vmatmul.f32.gmra.mxu0 %v418
    %v437 = vpop.f32.mrf.mxu0
    %v438 = vadd.f32 0.0, %v437
    %439 = vdwg.mxu0
    %v440 = vadd.f32 %v417, %v438
    %v441 = vmul.f32 %v440, %v52
    %v442 = vtanh.pop %v441
    %v443 = vmul.f32 %v442, %v52
    %v444 = vadd.f32 %v443, %v53
    %v445 = vmul.f32 %v444, %v402
    %447 = vrot.lane.b32.xlu0 %v444, 32
    %v448 = vpop.permute.xlu0 %447
    %v450 = vmul.f32 %v444, %v448
    %452 = vrot.lane.b32.xlu0 %v450, 32
    %v453 = vpop.permute.xlu0 %452
    %v455 = vadd.f32 %v445, %v453
    %v456 = vtanh.pop %v455
    %458 = vrot.lane.b32.xlu0 %v456, 32
    %v459 = vpop.permute.xlu0 %458
    %v461 = vmul.f32 %v444, %v459
    %463 = vrot.lane.b32.xlu0 %v461, 64
    %v464 = vpop.permute.xlu0 %463
    %466 = vst.msk [vmem:[#allocation7 + $0x3] sm:$0x1] %vm305, %v464
    %467 = vst.msk [vmem:[#allocation7 + $0xc] sm:$0x1] %vm307, %v464
    %v468 = vld [vmem:[#allocation2 + $0x4] sm:$0x1]
    %v469 = vld [vmem:[#allocation2 + $0xb] sm:$0x1]
    %v470 = vsel %vm48, %v468, %v469
    %v471 = vsel %vm254, %v464, 0
    %473 = vmatpush.msra.mxu0 0.0
    %474 = vmatpush.msra.mxu0 0.0
    %475 = vmatpush.msra.mxu0 0.0
    %476 = vmatpush.msra.mxu0 0.0
    %477 = vmatpush.msra.mxu0 0.0
    %478 = vmatpush.msra.mxu0 0.0
    %479 = vmatpush.msra.mxu0 0.0
    %480 = vmatpush.msra.mxu0 0.0
    %481 = vmatpush.msra.mxu0 0.0
    %482 = vmatpush.msra.mxu0 0.0
    %483 = vmatpush.msra.mxu0 0.0
    %484 = vmatpush.msra.mxu0 0.0
    %485 = vmatpush.msra.mxu0 %v250
    %486 = vmatpush.msra.mxu0 %v249
    %487 = vmatpush.msra.mxu0 %v248
    %488 = vmatpush.msra.mxu0 %v247
    %489 = vmatmul.f32.gmra.mxu0 %v471
    %v490 = vpop.f32.mrf.mxu0
    %v491 = vadd.f32 0.0, %v490
    %492 = vdwg.mxu0
    %v493 = vadd.f32 %v470, %v491
    %v494 = vmul.f32 %v493, %v52
    %v495 = vtanh.pop %v494
    %v496 = vmul.f32 %v495, %v52
    %v497 = vadd.f32 %v496, %v53
    %v498 = vmul.f32 %v497, %v455
    %500 = vrot.lane.b32.xlu0 %v497, 32
    %v501 = vpop.permute.xlu0 %500
    %v503 = vmul.f32 %v497, %v501
    %505 = vrot.lane.b32.xlu0 %v503, 32
    %v506 = vpop.permute.xlu0 %505
    %v508 = vadd.f32 %v498, %v506
    %v509 = vtanh.pop %v508
    %511 = vrot.lane.b32.xlu0 %v509, 32
    %v512 = vpop.permute.xlu0 %511
    %v514 = vmul.f32 %v497, %v512
    %516 = vrot.lane.b32.xlu0 %v514, 64
    %v517 = vpop.permute.xlu0 %516
    %519 = vst.msk [vmem:[#allocation7 + $0x4] sm:$0x1] %vm305, %v517
    %520 = vst.msk [vmem:[#allocation7 + $0xb] sm:$0x1] %vm307, %v517
    %v521 = vld [vmem:[#allocation2 + $0x5] sm:$0x1]
    %v522 = vld [vmem:[#allocation2 + $0xa] sm:$0x1]
    %v523 = vsel %vm48, %v521, %v522
    %v524 = vsel %vm254, %v517, 0
    %526 = vmatpush.msra.mxu0 0.0
    %527 = vmatpush.msra.mxu0 0.0
    %528 = vmatpush.msra.mxu0 0.0
    %529 = vmatpush.msra.mxu0 0.0
    %530 = vmatpush.msra.mxu0 0.0
    %531 = vmatpush.msra.mxu0 0.0
    %532 = vmatpush.msra.mxu0 0.0
    %533 = vmatpush.msra.mxu0 0.0
    %534 = vmatpush.msra.mxu0 0.0
    %535 = vmatpush.msra.mxu0 0.0
    %536 = vmatpush.msra.mxu0 0.0
    %537 = vmatpush.msra.mxu0 0.0
    %538 = vmatpush.msra.mxu0 %v250
    %539 = vmatpush.msra.mxu0 %v249
    %540 = vmatpush.msra.mxu0 %v248
    %541 = vmatpush.msra.mxu0 %v247
    %542 = vmatmul.f32.gmra.mxu0 %v524
    %v543 = vpop.f32.mrf.mxu0
    %v544 = vadd.f32 0.0, %v543
    %545 = vdwg.mxu0
    %v546 = vadd.f32 %v523, %v544
    %v547 = vmul.f32 %v546, %v52
    %v548 = vtanh.pop %v547
    %v549 = vmul.f32 %v548, %v52
    %v550 = vadd.f32 %v549, %v53
    %v551 = vmul.f32 %v550, %v508
    %553 = vrot.lane.b32.xlu0 %v550, 32
    %v554 = vpop.permute.xlu0 %553
    %v556 = vmul.f32 %v550, %v554
    %558 = vrot.lane.b32.xlu0 %v556, 32
    %v559 = vpop.permute.xlu0 %558
    %v561 = vadd.f32 %v551, %v559
    %v562 = vtanh.pop %v561
    %564 = vrot.lane.b32.xlu0 %v562, 32
    %v565 = vpop.permute.xlu0 %564
    %v567 = vmul.f32 %v550, %v565
    %569 = vrot.lane.b32.xlu0 %v567, 64
    %v570 = vpop.permute.xlu0 %569
    %572 = vst.msk [vmem:[#allocation7 + $0x5] sm:$0x1] %vm305, %v570
    %573 = vst.msk [vmem:[#allocation7 + $0xa] sm:$0x1] %vm307, %v570
    %v574 = vld [vmem:[#allocation2 + $0x6] sm:$0x1]
    %v575 = vld [vmem:[#allocation2 + $0x9] sm:$0x1]
    %v576 = vsel %vm48, %v574, %v575
    %v577 = vsel %vm254, %v570, 0
    %579 = vmatpush.msra.mxu0 0.0
    %580 = vmatpush.msra.mxu0 0.0
    %581 = vmatpush.msra.mxu0 0.0
    %582 = vmatpush.msra.mxu0 0.0
    %583 = vmatpush.msra.mxu0 0.0
    %584 = vmatpush.msra.mxu0 0.0
    %585 = vmatpush.msra.mxu0 0.0
    %586 = vmatpush.msra.mxu0 0.0
    %587 = vmatpush.msra.mxu0 0.0
    %588 = vmatpush.msra.mxu0 0.0
    %589 = vmatpush.msra.mxu0 0.0
    %590 = vmatpush.msra.mxu0 0.0
    %591 = vmatpush.msra.mxu0 %v250
    %592 = vmatpush.msra.mxu0 %v249
    %593 = vmatpush.msra.mxu0 %v248
    %594 = vmatpush.msra.mxu0 %v247
    %595 = vmatmul.f32.gmra.mxu0 %v577
    %v596 = vpop.f32.mrf.mxu0
    %v597 = vadd.f32 0.0, %v596
    %598 = vdwg.mxu0
    %v599 = vadd.f32 %v576, %v597
    %v600 = vmul.f32 %v599, %v52
    %v601 = vtanh.pop %v600
    %v602 = vmul.f32 %v601, %v52
    %v603 = vadd.f32 %v602, %v53
    %v604 = vmul.f32 %v603, %v561
    %606 = vrot.lane.b32.xlu0 %v603, 32
    %v607 = vpop.permute.xlu0 %606
    %v609 = vmul.f32 %v603, %v607
    %611 = vrot.lane.b32.xlu0 %v609, 32
    %v612 = vpop.permute.xlu0 %611
    %v614 = vadd.f32 %v604, %v612
    %v615 = vtanh.pop %v614
    %617 = vrot.lane.b32.xlu0 %v615, 32
    %v618 = vpop.permute.xlu0 %617
    %v620 = vmul.f32 %v603, %v618
    %622 = vrot.lane.b32.xlu0 %v620, 64
    %v623 = vpop.permute.xlu0 %622
    %625 = vst.msk [vmem:[#allocation7 + $0x6] sm:$0x1] %vm305, %v623
    %626 = vst.msk [vmem:[#allocation7 + $0x9] sm:$0x1] %vm307, %v623
    %v627 = vld [vmem:[#allocation2 + $0x7] sm:$0x1]
    %v628 = vld [vmem:[#allocation2 + $0x8] sm:$0x1]
    %v629 = vsel %vm48, %v627, %v628
    %v630 = vsel %vm254, %v623, 0
    %632 = vmatpush.msra.mxu0 0.0
    %633 = vmatpush.msra.mxu0 0.0
    %634 = vmatpush.msra.mxu0 0.0
    %635 = vmatpush.msra.mxu0 0.0
    %636 = vmatpush.msra.mxu0 0.0
    %637 = vmatpush.msra.mxu0 0.0
    %638 = vmatpush.msra.mxu0 0.0
    %639 = vmatpush.msra.mxu0 0.0
    %640 = vmatpush.msra.mxu0 0.0
    %641 = vmatpush.msra.mxu0 0.0
    %642 = vmatpush.msra.mxu0 0.0
    %643 = vmatpush.msra.mxu0 0.0
    %644 = vmatpush.msra.mxu0 %v250
    %645 = vmatpush.msra.mxu0 %v249
    %646 = vmatpush.msra.mxu0 %v248
    %647 = vmatpush.msra.mxu0 %v247
    %648 = vmatmul.f32.gmra.mxu0 %v630
    %v649 = vpop.f32.mrf.mxu0
    %v650 = vadd.f32 0.0, %v649
    %651 = vdwg.mxu0
    %v652 = vadd.f32 %v629, %v650
    %v653 = vmul.f32 %v652, %v52
    %v654 = vtanh.pop %v653
    %v655 = vmul.f32 %v654, %v52
    %v656 = vadd.f32 %v655, %v53
    %v657 = vmul.f32 %v656, %v614
    %659 = vrot.lane.b32.xlu0 %v656, 32
    %v660 = vpop.permute.xlu0 %659
    %v662 = vmul.f32 %v656, %v660
    %664 = vrot.lane.b32.xlu0 %v662, 32
    %v665 = vpop.permute.xlu0 %664
    %v667 = vadd.f32 %v657, %v665
    %v668 = vtanh.pop %v667
    %670 = vrot.lane.b32.xlu0 %v668, 32
    %v671 = vpop.permute.xlu0 %670
    %v673 = vmul.f32 %v656, %v671
    %675 = vrot.lane.b32.xlu0 %v673, 64
    %v676 = vpop.permute.xlu0 %675
    %678 = vst.msk [vmem:[#allocation7 + $0x7] sm:$0x1] %vm305, %v676
    %679 = vst.msk [vmem:[#allocation7 + $0x8] sm:$0x1] %vm307, %v676
    %v680 = vld [vmem:[#allocation2 + $0x8] sm:$0x1]
    %v681 = vld [vmem:[#allocation2 + $0x7] sm:$0x1]
    %v682 = vsel %vm48, %v680, %v681
    %v683 = vsel %vm254, %v676, 0
    %685 = vmatpush.msra.mxu0 0.0
    %686 = vmatpush.msra.mxu0 0.0
    %687 = vmatpush.msra.mxu0 0.0
    %688 = vmatpush.msra.mxu0 0.0
    %689 = vmatpush.msra.mxu0 0.0
    %690 = vmatpush.msra.mxu0 0.0
    %691 = vmatpush.msra.mxu0 0.0
    %692 = vmatpush.msra.mxu0 0.0
    %693 = vmatpush.msra.mxu0 0.0
    %694 = vmatpush.msra.mxu0 0.0
    %695 = vmatpush.msra.mxu0 0.0
    %696 = vmatpush.msra.mxu0 0.0
    %697 = vmatpush.msra.mxu0 %v250
    %698 = vmatpush.msra.mxu0 %v249
    %699 = vmatpush.msra.mxu0 %v248
    %700 = vmatpush.msra.mxu0 %v247
    %701 = vmatmul.f32.gmra.mxu0 %v683
    %v702 = vpop.f32.mrf.mxu0
    %v703 = vadd.f32 0.0, %v702
    %704 = vdwg.mxu0
    %v705 = vadd.f32 %v682, %v703
    %v706 = vmul.f32 %v705, %v52
    %v707 = vtanh.pop %v706
    %v708 = vmul.f32 %v707, %v52
    %v709 = vadd.f32 %v708, %v53
    %v710 = vmul.f32 %v709, %v667
    %712 = vrot.lane.b32.xlu0 %v709, 32
    %v713 = vpop.permute.xlu0 %712
    %v715 = vmul.f32 %v709, %v713
    %717 = vrot.lane.b32.xlu0 %v715, 32
    %v718 = vpop.permute.xlu0 %717
    %v720 = vadd.f32 %v710, %v718
    %v721 = vtanh.pop %v720
    %723 = vrot.lane.b32.xlu0 %v721, 32
    %v724 = vpop.permute.xlu0 %723
    %v726 = vmul.f32 %v709, %v724
    %728 = vrot.lane.b32.xlu0 %v726, 64
    %v729 = vpop.permute.xlu0 %728
    %731 = vst.msk [vmem:[#allocation7 + $0x8] sm:$0x1] %vm305, %v729
    %732 = vst.msk [vmem:[#allocation7 + $0x7] sm:$0x1] %vm307, %v729
    %v733 = vld [vmem:[#allocation2 + $0x9] sm:$0x1]
    %v734 = vld [vmem:[#allocation2 + $0x6] sm:$0x1]
    %v735 = vsel %vm48, %v733, %v734
    %v736 = vsel %vm254, %v729, 0
    %738 = vmatpush.msra.mxu0 0.0
    %739 = vmatpush.msra.mxu0 0.0
    %740 = vmatpush.msra.mxu0 0.0
    %741 = vmatpush.msra.mxu0 0.0
    %742 = vmatpush.msra.mxu0 0.0
    %743 = vmatpush.msra.mxu0 0.0
    %744 = vmatpush.msra.mxu0 0.0
    %745 = vmatpush.msra.mxu0 0.0
    %746 = vmatpush.msra.mxu0 0.0
    %747 = vmatpush.msra.mxu0 0.0
    %748 = vmatpush.msra.mxu0 0.0
    %749 = vmatpush.msra.mxu0 0.0
    %750 = vmatpush.msra.mxu0 %v250
    %751 = vmatpush.msra.mxu0 %v249
    %752 = vmatpush.msra.mxu0 %v248
    %753 = vmatpush.msra.mxu0 %v247
    %754 = vmatmul.f32.gmra.mxu0 %v736
    %v755 = vpop.f32.mrf.mxu0
    %v756 = vadd.f32 0.0, %v755
    %757 = vdwg.mxu0
    %v758 = vadd.f32 %v735, %v756
    %v759 = vmul.f32 %v758, %v52
    %v760 = vtanh.pop %v759
    %v761 = vmul.f32 %v760, %v52
    %v762 = vadd.f32 %v761, %v53
    %v763 = vmul.f32 %v762, %v720
    %765 = vrot.lane.b32.xlu0 %v762, 32
    %v766 = vpop.permute.xlu0 %765
    %v768 = vmul.f32 %v762, %v766
    %770 = vrot.lane.b32.xlu0 %v768, 32
    %v771 = vpop.permute.xlu0 %770
    %v773 = vadd.f32 %v763, %v771
    %v774 = vtanh.pop %v773
    %776 = vrot.lane.b32.xlu0 %v774, 32
    %v777 = vpop.permute.xlu0 %776
    %v779 = vmul.f32 %v762, %v777
    %781 = vrot.lane.b32.xlu0 %v779, 64
    %v782 = vpop.permute.xlu0 %781
    %784 = vst.msk [vmem:[#allocation7 + $0x9] sm:$0x1] %vm305, %v782
    %785 = vst.msk [vmem:[#allocation7 + $0x6] sm:$0x1] %vm307, %v782
    %v786 = vld [vmem:[#allocation2 + $0xa] sm:$0x1]
    %v787 = vld [vmem:[#allocation2 + $0x5] sm:$0x1]
    %v788 = vsel %vm48, %v786, %v787
    %v789 = vsel %vm254, %v782, 0
    %791 = vmatpush.msra.mxu0 0.0
    %792 = vmatpush.msra.mxu0 0.0
    %793 = vmatpush.msra.mxu0 0.0
    %794 = vmatpush.msra.mxu0 0.0
    %795 = vmatpush.msra.mxu0 0.0
    %796 = vmatpush.msra.mxu0 0.0
    %797 = vmatpush.msra.mxu0 0.0
    %798 = vmatpush.msra.mxu0 0.0
    %799 = vmatpush.msra.mxu0 0.0
    %800 = vmatpush.msra.mxu0 0.0
    %801 = vmatpush.msra.mxu0 0.0
    %802 = vmatpush.msra.mxu0 0.0
    %803 = vmatpush.msra.mxu0 %v250
    %804 = vmatpush.msra.mxu0 %v249
    %805 = vmatpush.msra.mxu0 %v248
    %806 = vmatpush.msra.mxu0 %v247
    %807 = vmatmul.f32.gmra.mxu0 %v789
    %v808 = vpop.f32.mrf.mxu0
    %v809 = vadd.f32 0.0, %v808
    %810 = vdwg.mxu0
    %v811 = vadd.f32 %v788, %v809
    %v812 = vmul.f32 %v811, %v52
    %v813 = vtanh.pop %v812
    %v814 = vmul.f32 %v813, %v52
    %v815 = vadd.f32 %v814, %v53
    %v816 = vmul.f32 %v815, %v773
    %818 = vrot.lane.b32.xlu0 %v815, 32
    %v819 = vpop.permute.xlu0 %818
    %v821 = vmul.f32 %v815, %v819
    %823 = vrot.lane.b32.xlu0 %v821, 32
    %v824 = vpop.permute.xlu0 %823
    %v826 = vadd.f32 %v816, %v824
    %v827 = vtanh.pop %v826
    %829 = vrot.lane.b32.xlu0 %v827, 32
    %v830 = vpop.permute.xlu0 %829
    %v832 = vmul.f32 %v815, %v830
    %834 = vrot.lane.b32.xlu0 %v832, 64
    %v835 = vpop.permute.xlu0 %834
    %837 = vst.msk [vmem:[#allocation7 + $0xa] sm:$0x1] %vm305, %v835
    %838 = vst.msk [vmem:[#allocation7 + $0x5] sm:$0x1] %vm307, %v835
    %v839 = vld [vmem:[#allocation2 + $0xb] sm:$0x1]
    %v840 = vld [vmem:[#allocation2 + $0x4] sm:$0x1]
    %v841 = vsel %vm48, %v839, %v840
    %v842 = vsel %vm254, %v835, 0
    %844 = vmatpush.msra.mxu0 0.0
    %845 = vmatpush.msra.mxu0 0.0
    %846 = vmatpush.msra.mxu0 0.0
    %847 = vmatpush.msra.mxu0 0.0
    %848 = vmatpush.msra.mxu0 0.0
    %849 = vmatpush.msra.mxu0 0.0
    %850 = vmatpush.msra.mxu0 0.0
    %851 = vmatpush.msra.mxu0 0.0
    %852 = vmatpush.msra.mxu0 0.0
    %853 = vmatpush.msra.mxu0 0.0
    %854 = vmatpush.msra.mxu0 0.0
    %855 = vmatpush.msra.mxu0 0.0
    %856 = vmatpush.msra.mxu0 %v250
    %857 = vmatpush.msra.mxu0 %v249
    %858 = vmatpush.msra.mxu0 %v248
    %859 = vmatpush.msra.mxu0 %v247
    %860 = vmatmul.f32.gmra.mxu0 %v842
    %v861 = vpop.f32.mrf.mxu0
    %v862 = vadd.f32 0.0, %v861
    %863 = vdwg.mxu0
    %v864 = vadd.f32 %v841, %v862
    %v865 = vmul.f32 %v864, %v52
    %v866 = vtanh.pop %v865
    %v867 = vmul.f32 %v866, %v52
    %v868 = vadd.f32 %v867, %v53
    %v869 = vmul.f32 %v868, %v826
    %871 = vrot.lane.b32.xlu0 %v868, 32
    %v872 = vpop.permute.xlu0 %871
    %v874 = vmul.f32 %v868, %v872
    %876 = vrot.lane.b32.xlu0 %v874, 32
    %v877 = vpop.permute.xlu0 %876
    %v879 = vadd.f32 %v869, %v877
    %v880 = vtanh.pop %v879
    %882 = vrot.lane.b32.xlu0 %v880, 32
    %v883 = vpop.permute.xlu0 %882
    %v885 = vmul.f32 %v868, %v883
    %887 = vrot.lane.b32.xlu0 %v885, 64
    %v888 = vpop.permute.xlu0 %887
    %890 = vst.msk [vmem:[#allocation7 + $0xb] sm:$0x1] %vm305, %v888
    %891 = vst.msk [vmem:[#allocation7 + $0x4] sm:$0x1] %vm307, %v888
    %v892 = vld [vmem:[#allocation2 + $0xc] sm:$0x1]
    %v893 = vld [vmem:[#allocation2 + $0x3] sm:$0x1]
    %v894 = vsel %vm48, %v892, %v893
    %v895 = vsel %vm254, %v888, 0
    %897 = vmatpush.msra.mxu0 0.0
    %898 = vmatpush.msra.mxu0 0.0
    %899 = vmatpush.msra.mxu0 0.0
    %900 = vmatpush.msra.mxu0 0.0
    %901 = vmatpush.msra.mxu0 0.0
    %902 = vmatpush.msra.mxu0 0.0
    %903 = vmatpush.msra.mxu0 0.0
    %904 = vmatpush.msra.mxu0 0.0
    %905 = vmatpush.msra.mxu0 0.0
    %906 = vmatpush.msra.mxu0 0.0
    %907 = vmatpush.msra.mxu0 0.0
    %908 = vmatpush.msra.mxu0 0.0
    %909 = vmatpush.msra.mxu0 %v250
    %910 = vmatpush.msra.mxu0 %v249
    %911 = vmatpush.msra.mxu0 %v248
    %912 = vmatpush.msra.mxu0 %v247
    %913 = vmatmul.f32.gmra.mxu0 %v895
    %v914 = vpop.f32.mrf.mxu0
    %v915 = vadd.f32 0.0, %v914
    %916 = vdwg.mxu0
    %v917 = vadd.f32 %v894, %v915
    %v918 = vmul.f32 %v917, %v52
    %v919 = vtanh.pop %v918
    %v920 = vmul.f32 %v919, %v52
    %v921 = vadd.f32 %v920, %v53
    %v922 = vmul.f32 %v921, %v879
    %924 = vrot.lane.b32.xlu0 %v921, 32
    %v925 = vpop.permute.xlu0 %924
    %v927 = vmul.f32 %v921, %v925
    %929 = vrot.lane.b32.xlu0 %v927, 32
    %v930 = vpop.permute.xlu0 %929
    %v932 = vadd.f32 %v922, %v930
    %v933 = vtanh.pop %v932
    %935 = vrot.lane.b32.xlu0 %v933, 32
    %v936 = vpop.permute.xlu0 %935
    %v938 = vmul.f32 %v921, %v936
    %940 = vrot.lane.b32.xlu0 %v938, 64
    %v941 = vpop.permute.xlu0 %940
    %943 = vst.msk [vmem:[#allocation7 + $0xc] sm:$0x1] %vm305, %v941
    %944 = vst.msk [vmem:[#allocation7 + $0x3] sm:$0x1] %vm307, %v941
    %v945 = vld [vmem:[#allocation2 + $0xd] sm:$0x1]
    %v946 = vld [vmem:[#allocation2 + $0x2] sm:$0x1]
    %v947 = vsel %vm48, %v945, %v946
    %v948 = vsel %vm254, %v941, 0
    %950 = vmatpush.msra.mxu0 0.0
    %951 = vmatpush.msra.mxu0 0.0
    %952 = vmatpush.msra.mxu0 0.0
    %953 = vmatpush.msra.mxu0 0.0
    %954 = vmatpush.msra.mxu0 0.0
    %955 = vmatpush.msra.mxu0 0.0
    %956 = vmatpush.msra.mxu0 0.0
    %957 = vmatpush.msra.mxu0 0.0
    %958 = vmatpush.msra.mxu0 0.0
    %959 = vmatpush.msra.mxu0 0.0
    %960 = vmatpush.msra.mxu0 0.0
    %961 = vmatpush.msra.mxu0 0.0
    %962 = vmatpush.msra.mxu0 %v250
    %963 = vmatpush.msra.mxu0 %v249
    %964 = vmatpush.msra.mxu0 %v248
    %965 = vmatpush.msra.mxu0 %v247
    %966 = vmatmul.f32.gmra.mxu0 %v948
    %v967 = vpop.f32.mrf.mxu0
    %v968 = vadd.f32 0.0, %v967
    %969 = vdwg.mxu0
    %v970 = vadd.f32 %v947, %v968
    %v971 = vmul.f32 %v970, %v52
    %v972 = vtanh.pop %v971
    %v973 = vmul.f32 %v972, %v52
    %v974 = vadd.f32 %v973, %v53
    %v975 = vmul.f32 %v974, %v932
    %977 = vrot.lane.b32.xlu0 %v974, 32
    %v978 = vpop.permute.xlu0 %977
    %v980 = vmul.f32 %v974, %v978
    %982 = vrot.lane.b32.xlu0 %v980, 32
    %v983 = vpop.permute.xlu0 %982
    %v985 = vadd.f32 %v975, %v983
    %v986 = vtanh.pop %v985
    %988 = vrot.lane.b32.xlu0 %v986, 32
    %v989 = vpop.permute.xlu0 %988
    %v991 = vmul.f32 %v974, %v989
    %993 = vrot.lane.b32.xlu0 %v991, 64
    %v994 = vpop.permute.xlu0 %993
    %996 = vst.msk [vmem:[#allocation7 + $0xd] sm:$0x1] %vm305, %v994
    %997 = vst.msk [vmem:[#allocation7 + $0x2] sm:$0x1] %vm307, %v994
    %v998 = vld [vmem:[#allocation2 + $0xe] sm:$0x1]
    %v999 = vld [vmem:[#allocation2 + $0x1] sm:$0x1]
    %v1000 = vsel %vm48, %v998, %v999
    %v1001 = vsel %vm254, %v994, 0
    %1003 = vmatpush.msra.mxu0 0.0
    %1004 = vmatpush.msra.mxu0 0.0
    %1005 = vmatpush.msra.mxu0 0.0
    %1006 = vmatpush.msra.mxu0 0.0
    %1007 = vmatpush.msra.mxu0 0.0
    %1008 = vmatpush.msra.mxu0 0.0
    %1009 = vmatpush.msra.mxu0 0.0
    %1010 = vmatpush.msra.mxu0 0.0
    %1011 = vmatpush.msra.mxu0 0.0
    %1012 = vmatpush.msra.mxu0 0.0
    %1013 = vmatpush.msra.mxu0 0.0
    %1014 = vmatpush.msra.mxu0 0.0
    %1015 = vmatpush.msra.mxu0 %v250
    %1016 = vmatpush.msra.mxu0 %v249
    %1017 = vmatpush.msra.mxu0 %v248
    %1018 = vmatpush.msra.mxu0 %v247
    %1019 = vmatmul.f32.gmra.mxu0 %v1001
    %v1020 = vpop.f32.mrf.mxu0
    %v1021 = vadd.f32 0.0, %v1020
    %1022 = vdwg.mxu0
    %v1023 = vadd.f32 %v1000, %v1021
    %v1024 = vmul.f32 %v1023, %v52
    %v1025 = vtanh.pop %v1024
    %v1026 = vmul.f32 %v1025, %v52
    %v1027 = vadd.f32 %v1026, %v53
    %v1028 = vmul.f32 %v1027, %v985
    %1030 = vrot.lane.b32.xlu0 %v1027, 32
    %v1031 = vpop.permute.xlu0 %1030
    %v1033 = vmul.f32 %v1027, %v1031
    %1035 = vrot.lane.b32.xlu0 %v1033, 32
    %v1036 = vpop.permute.xlu0 %1035
    %v1038 = vadd.f32 %v1028, %v1036
    %v1039 = vtanh.pop %v1038
    %1041 = vrot.lane.b32.xlu0 %v1039, 32
    %v1042 = vpop.permute.xlu0 %1041
    %v1044 = vmul.f32 %v1027, %v1042
    %1046 = vrot.lane.b32.xlu0 %v1044, 64
    %v1047 = vpop.permute.xlu0 %1046
    %1049 = vst.msk [vmem:[#allocation7 + $0xe] sm:$0x1] %vm305, %v1047
    %1050 = vst.msk [vmem:[#allocation7 + $0x1] sm:$0x1] %vm307, %v1047
    %v1051 = vld [vmem:[#allocation2 + $0xf] sm:$0x1]
    %v1052 = vld [vmem:[#allocation2] sm:$0x1]
    %v1053 = vsel %vm48, %v1051, %v1052
    %v1054 = vsel %vm254, %v1047, 0
    %1056 = vmatpush.msra.mxu0 0.0
    %1057 = vmatpush.msra.mxu0 0.0
    %1058 = vmatpush.msra.mxu0 0.0
    %1059 = vmatpush.msra.mxu0 0.0
    %1060 = vmatpush.msra.mxu0 0.0
    %1061 = vmatpush.msra.mxu0 0.0
    %1062 = vmatpush.msra.mxu0 0.0
    %1063 = vmatpush.msra.mxu0 0.0
    %1064 = vmatpush.msra.mxu0 0.0
    %1065 = vmatpush.msra.mxu0 0.0
    %1066 = vmatpush.msra.mxu0 0.0
    %1067 = vmatpush.msra.mxu0 0.0
    %1068 = vmatpush.msra.mxu0 %v250
    %1069 = vmatpush.msra.mxu0 %v249
    %1070 = vmatpush.msra.mxu0 %v248
    %1071 = vmatpush.msra.mxu0 %v247
    %1072 = vmatmul.f32.gmra.mxu0 %v1054
    %v1073 = vpop.f32.mrf.mxu0
    %v1074 = vadd.f32 0.0, %v1073
    %1075 = vdwg.mxu0
    %v1076 = vadd.f32 %v1053, %v1074
    %v1077 = vmul.f32 %v1076, %v52
    %v1078 = vtanh.pop %v1077
    %v1079 = vmul.f32 %v1078, %v52
    %v1080 = vadd.f32 %v1079, %v53
    %v1081 = vmul.f32 %v1080, %v1038
    %1083 = vrot.lane.b32.xlu0 %v1080, 32
    %v1084 = vpop.permute.xlu0 %1083
    %v1086 = vmul.f32 %v1080, %v1084
    %1088 = vrot.lane.b32.xlu0 %v1086, 32
    %v1089 = vpop.permute.xlu0 %1088
    %v1091 = vadd.f32 %v1081, %v1089
    %v1092 = vtanh.pop %v1091
    %1094 = vrot.lane.b32.xlu0 %v1092, 32
    %v1095 = vpop.permute.xlu0 %1094
    %v1097 = vmul.f32 %v1080, %v1095
    %1099 = vrot.lane.b32.xlu0 %v1097, 64
    %v1100 = vpop.permute.xlu0 %1099
    %1102 = vst.msk [vmem:[#allocation7 + $0xf] sm:$0x1] %vm305, %v1100
    %1103 = vst.msk [vmem:[#allocation7] sm:$0x1] %vm307, %v1100
    // Predicated region
    $region22: #{brnns_char_forward.1} parent=1 // pred_check
      _
    $region23: #{brnns_char_forward.1} parent=1 // pred_check_branch
      %1105 = sbr.rel (0) target = $region25
    $region24: #{brnns_char_forward.1} parent=1 // pred_region
      %1107 = vsyncadd [#allocation6], 0
      %s1108 = sshll.u32 [#allocation7], 4
      %s1109 = int_to_ptr.vmem [resolvable:$true] %s1108
      %s1110 = sshll.u32 %s4, 4
      %s1111 = int_to_ptr.hbm [resolvable:$true] %s1110
      %1116 = dma.vmem_to_hbm [thread:$0]  %s1109, 256, %s1111, [#allocation6], 128, 128, 8
    $region25: #{brnns_char_forward.1} parent=1 // pred_fallthru
      _
    // Predicated region
    $region26: #{brnns_char_forward.1} parent=1 // pred_check
      _
    $region27: #{brnns_char_forward.1} parent=1 // pred_check_branch
      %1118 = sbr.rel (0) target = $region29
    $region28: #{brnns_char_forward.1} parent=1 // pred_region
      %1120 = dma.done [#allocation6], 256
    $region29: #{brnns_char_forward.1} parent=1 // pred_fallthru
      _
    %1121 = vsyncpa [#allocation5], 1
    %1122 = vsyncpa [#allocation6], 1

</llo_original>
